<compile_context>
chip_gen: v5e
topology: v5e:2x2
jax: 0.10.0
libtpu: 0.0.40
codegen_flags: <defaults>
</compile_context>

<pallas_src>
import functools

import numpy as np
import jax
import jax.numpy as jnp
from jax.experimental import pallas as pl
from jax.experimental.pallas import tpu as pltpu

_EPS = 1e-5


def _round_up(x, m):
    return ((x + m - 1) // m) * m


# ----------------------------- in-kernel math helpers -----------------------------
def _celu(y):
    # CELU, alpha=1 (PyTorch default): max(0, x) + min(0, exp(x) - 1)
    return jnp.where(y > 0, y, jnp.exp(jnp.minimum(y, 0.0)) - 1.0)


def _dot(a, b_bf16):
    # MXU matmul: bf16 operands (native on v5e/v6e/v7x), f32 accumulation.
    return jnp.dot(a.astype(jnp.bfloat16), b_bf16, preferred_element_type=jnp.float32)


def _batchnorm(x, n_valid):
    # BatchNorm1d(momentum=1.0, affine=False), training mode: biased batch stats over the
    # first n_valid rows only (rows >= n_valid are batch padding).
    if n_valid == x.shape[0]:
        mean = jnp.mean(x, axis=0, keepdims=True)
        d = x - mean
        var = jnp.mean(d * d, axis=0, keepdims=True)
    else:
        ridx = jax.lax.broadcasted_iota(jnp.int32, x.shape, 0)
        m = (ridx < n_valid).astype(x.dtype)
        inv = 1.0 / float(n_valid)
        mean = jnp.sum(x * m, axis=0, keepdims=True) * inv
        d = (x - mean) * m
        var = jnp.sum(d * d, axis=0, keepdims=True) * inv
    return (x - mean) * jax.lax.rsqrt(var + _EPS)


# --------------------------------- fused kernel -----------------------------------
def _fused_kernel(slab_ref, z_ref, x_ref, out_ref, *, meta):
    idx = meta["idx"]

    def rd(name):
        r0, nr, nc = idx[name]
        return slab_ref[r0:r0 + nr, 0:nc]

    def rd_bf(name):
        return rd(name).astype(jnp.bfloat16)

    B_pad, B_val, T = meta["b_pad"], meta["b_valid"], meta["T"]
    AH, BH = meta["a_hid"], meta["b_hid"]
    hsz = meta["hsz"]
    H4 = 4 * hsz

    u = z_ref[...]            # (B_pad, udim) f32
    x2d = x_ref[...]          # (T*B_pad, xdim) f32, time-major: row = t*B_pad + b

    # ---------------- alpha / beta ICNNs (shared input u) ----------------
    # ONE fused u-matmul: [alpha.w0 | beta.w0 | alpha skips... | beta skips...] (+ biases)
    U = _dot(u, rd_bf("wu")) + rd("bu")                 # (B_pad, NU)
    H0 = _celu(U[:, 0:AH + BH])
    h_a, h_b = H0[:, 0:AH], H0[:, AH:AH + BH]
    off = AH + BH
    a_sk = []
    for w in meta["a_skip_widths"]:
        a_sk.append(U[:, off:off + w])
        off += w
    b_sk = []
    for w in meta["b_skip_widths"]:
        b_sk.append(U[:, off:off + w])
        off += w

    quad = 0.5 * jnp.sum(u * u, axis=1, keepdims=True)

    h = h_a
    na = meta["n_a_layers"]
    for i in range(na - 1):
        h = _celu(_dot(h, rd_bf(f"a_wz{i}")) + a_sk[i])
    alpha = _dot(h, rd_bf(f"a_wz{na - 1}")) + a_sk[na - 1] + quad    # (B_pad, 1)

    h = h_b
    nb = meta["n_b_layers"]
    for i in range(nb - 1):
        h = _celu(_dot(h, rd_bf(f"b_wz{i}")) + b_sk[i])
    beta = _dot(h, rd_bf(f"b_wz{nb - 1}")) + b_sk[nb - 1] + quad     # (B_pad, fdim)

    # ---------------- DeepSets f1 ----------------
    h = x2d
    ncom = meta["f1_common_n"]
    for i in range(ncom - 1):
        h = jnp.maximum(_dot(h, rd_bf(f"f1c_w{i}")) + rd(f"f1c_b{i}"), 0.0)
    phi = _dot(h, rd_bf(f"f1c_w{ncom - 1}")) + rd(f"f1c_b{ncom - 1}")  # (T*B_pad, f1dim)
    # mean over the set axis: T-1 tile-aligned VPU adds (no pool matrix / MXU issue)
    pooled = phi[0:B_pad, :]
    for t in range(1, T):
        pooled = pooled + phi[t * B_pad:(t + 1) * B_pad, :]
    pooled = pooled * (1.0 / T)
    h = pooled
    nnx = meta["f1_next_n"]
    for i in range(nnx - 1):
        h = jnp.maximum(_dot(h, rd_bf(f"f1n_w{i}")) + rd(f"f1n_b{i}"), 0.0)
    f1 = _batchnorm(_dot(h, rd_bf(f"f1n_w{nnx - 1}")) + rd(f"f1n_b{nnx - 1}"), B_val)

    # ---------------- BiRNN f2 (single-layer unidirectional LSTM) ----------------
    # input projection hoisted out of the recurrence: one (T*B_pad, 4H) matmul
    gates_x = _dot(x2d, rd_bf("w_ih")) + rd("lstm_b")    # (T*B_pad, 4H)
    whh = rd_bf("whh_pad")                               # (4H, 4H), rows [3H:4H] = W_hh
    lane = jax.lax.broadcasted_iota(jnp.int32, (B_pad, H4), 1)
    is_g = jnp.logical_and(lane >= 2 * hsz, lane < 3 * hsz)   # tanh lanes (gate "g")
    h_st = jnp.zeros((B_pad, H4), jnp.float32)   # valid h lives at lanes [3H:4H]
    c_st = jnp.zeros((B_pad, H4), jnp.float32)   # valid c lives at lanes [H:2H]
    # T is small & static -> fully unrolled straight-line recurrence.
    for t in range(T):
        g = gates_x[t * B_pad:(t + 1) * B_pad, :] + _dot(h_st, whh)
        # one masked EUP pass over the full gate vreg: [i | f | g | o]
        act = jnp.where(is_g, jnp.tanh(g), jax.nn.sigmoid(g))
        # lane alignment via XLU rolls (direction-agnostic: shifts of H over a 2H-periodic
        # value and shifts of 2H over a 4H-wide vector).
        prod = act * pltpu.roll(act, shift=2 * hsz, axis=1)        # lanes [0:H]  = i*g
        c_st = act * c_st + pltpu.roll(prod, shift=hsz, axis=1)    # lanes [H:2H] = f*c + i*g
        h_st = act * pltpu.roll(jnp.tanh(c_st), shift=2 * hsz, axis=1)  # [3H:4H] = o*tanh(c)
    f2 = _batchnorm(_dot(h_st, rd_bf("fc_w_pad")) + rd("fc_b"), B_val)   # (B_pad, f2dim)

    # ---------------- lane-dense output slab: [alpha | beta | f1 | f2 | 0-pad] ----------
    fdim, f1d, f2d = meta["fdim"], meta["f1dim"], meta["f2dim"]
    out_ref[...] = jnp.zeros(out_ref.shape, out_ref.dtype)
    out_ref[:, 0:1] = alpha
    out_ref[:, 1:1 + fdim] = beta
    out_ref[:, 1 + fdim:1 + fdim + f1d] = f1
    out_ref[:, 1 + fdim + f1d:1 + fdim + f1d + f2d] = f2


# ------------------------------ parameter slab packing ------------------------------
class _SlabPacker:
    """Packs 2-D weight blocks into one contiguous f32 (rows, width) slab.
    Every entry starts on an 8-row (sublane-tile) boundary."""

    def __init__(self, width):
        self.width = width
        self.parts = []
        self.rows = 0
        self.index = {}

    def add(self, name, arr):
        a = np.asarray(arr, np.float32)
        if a.ndim == 1:
            a = a.reshape(1, -1)
        r, c = a.shape
        assert c <= self.width, (name, a.shape, self.width)
        buf = np.zeros((r, self.width), np.float32)
        buf[:, :c] = a
        self.index[name] = (self.rows, r, c)
        self.parts.append(buf)
        self.rows += r
        pad = (-self.rows) % 8
        if pad:
            self.parts.append(np.zeros((pad, self.width), np.float32))
            self.rows += pad

    def finalize(self):
        return np.concatenate(self.parts, axis=0)


def pack_ccq_params(params):
    """Pack every weight into ONE contiguous f32 slab (single prologue DMA).
    Done once, eagerly, outside the jitted per-call path."""
    pa, pb = params["alpha"], params["beta"]
    pf1, pf2 = params["f1"], params["f2"]

    udim = int(pa["w0"].shape[0])
    AH, BH = int(pa["w0"].shape[1]), int(pb["w0"].shape[1])
    a_skip_w = [int(w.shape[1]) for w in pa["wxs"]]
    b_skip_w = [int(w.shape[1]) for w in pb["wxs"]]

    # fused u-projection: [alpha.w0 | beta.w0 | alpha.wx_* | beta.wx_*] and fused bias row
    wu = np.concatenate(
        [np.asarray(pa["w0"]), np.asarray(pb["w0"])]
        + [np.asarray(w) for w in pa["wxs"]]
        + [np.asarray(w) for w in pb["wxs"]], axis=1).astype(np.float32)
    bu = np.concatenate(
        [np.asarray(pa["b0"]).reshape(-1), np.asarray(pb["b0"]).reshape(-1)]
        + [np.asarray(b).reshape(-1) for b in pa["bxs"]]
        + [np.asarray(b).reshape(-1) for b in pb["bxs"]]).astype(np.float32).reshape(1, -1)

    hsz = int(pf2["w_hh"].shape[0])
    H4 = 4 * hsz
    f2dim = int(pf2["fc_w"].shape[1])
    width = max(128, _round_up(wu.shape[1], 128), _round_up(H4, 128))

    sp = _SlabPacker(width)
    sp.add("wu", wu)
    sp.add("bu", bu)
    for i, wz in enumerate(pa["wzs"]):
        sp.add(f"a_wz{i}", wz)
    for i, wz in enumerate(pb["wzs"]):
        sp.add(f"b_wz{i}", wz)
    for i, (w, b) in enumerate(pf1["common"]):
        sp.add(f"f1c_w{i}", w)
        sp.add(f"f1c_b{i}", b)
    for i, (w, b) in enumerate(pf1["next"]):
        sp.add(f"f1n_w{i}", w)
        sp.add(f"f1n_b{i}", b)
    sp.add("w_ih", pf2["w_ih"])
    sp.add("lstm_b", pf2["b"])
    # zero-row-padded recurrent / fc weights so the 4H-lane LSTM state feeds the MXU
    # directly (valid h lives at lanes [3H:4H]); built for free at pack time.
    whh_pad = np.zeros((H4, H4), np.float32)
    whh_pad[3 * hsz:, :] = np.asarray(pf2["w_hh"])
    sp.add("whh_pad", whh_pad)
    fcw_pad = np.zeros((H4, f2dim), np.float32)
    fcw_pad[3 * hsz:, :] = np.asarray(pf2["fc_w"])
    sp.add("fc_w_pad", fcw_pad)
    sp.add("fc_b", pf2["fc_b"])

    slab = jnp.asarray(sp.finalize())
    f1dim = int(pf1["next"][-1][0].shape[1])
    fdim = int(pb["wzs"][-1].shape[1])
    meta = dict(idx=sp.index, udim=udim, a_hid=AH, b_hid=BH,
                a_skip_widths=a_skip_w, b_skip_widths=b_skip_w,
                n_a_layers=len(pa["wzs"]), n_b_layers=len(pb["wzs"]),
                f1_common_n=len(pf1["common"]), f1_next_n=len(pf1["next"]),
                hsz=hsz, f1dim=f1dim, f2dim=f2dim, fdim=fdim)
    return slab, meta


# ------------------------------------ wrapper --------------------------------------
def _full_spec(shape):
    nd = len(shape)
    return pl.BlockSpec(shape, lambda i, _nd=nd: (0,) * _nd)


def ccq_forward(slab, z, x, *, meta):
    """alpha, beta, f = ConditionalConvexQuantile.forward(z, x) — one fused kernel."""
    B, T, xdim = x.shape
    udim = z.shape[1]
    B_pad = _round_up(max(B, 8), 8)        # sublane-tile-aligned batch

    if B_pad != B:
        z_p = jnp.zeros((B_pad, udim), z.dtype).at[:B, :].set(z)
        x_p = jnp.zeros((B_pad, T, xdim), x.dtype).at[:B, :, :].set(x)
    else:
        z_p, x_p = z, x
    # time-major flatten: LSTM step t reads tile-aligned row block [t*B_pad, (t+1)*B_pad)
    x2d = jnp.transpose(x_p, (1, 0, 2)).reshape(T * B_pad, xdim)

    fdim, f1dim, f2dim = meta["fdim"], meta["f1dim"], meta["f2dim"]
    total = 1 + fdim + f1dim + f2dim
    out_w = max(128, _round_up(total, 128))

    kmeta = dict(meta)
    kmeta.update(b_pad=B_pad, b_valid=B, T=T)

    out = pl.pallas_call(
        functools.partial(_fused_kernel, meta=kmeta),
        grid=(1,),
        in_specs=[_full_spec(slab.shape),
                  _full_spec((B_pad, udim)),
                  _full_spec((T * B_pad, xdim))],
        out_specs=_full_spec((B_pad, out_w)),
        out_shape=jax.ShapeDtypeStruct((B_pad, out_w), jnp.float32),
        compiler_params=pltpu.CompilerParams(
            dimension_semantics=("arbitrary",),
            vmem_limit_bytes=32 * 1024 * 1024,
        ),
    )(slab, z_p, x2d)

    alpha = out[:B, 0:1]
    beta = out[:B, 1:1 + fdim]
    f = out[:B, 1 + fdim:1 + fdim + f1dim + f2dim]
    return alpha, beta, f


# --------------------------- parameter initialization -------------------------------
def _init_linear(key, din, dout):
    kw, kb = jax.random.split(key)
    s = 1.0 / np.sqrt(din)
    w = jax.random.uniform(kw, (din, dout), jnp.float32, -s, s)
    b = jax.random.uniform(kb, (dout,), jnp.float32, -s, s)
    return w, b


def init_icnn(key, input_dim, hidden_dim, num_layer, out_dim=1):
    keys = jax.random.split(key, 2 * num_layer + 1)
    w0, b0 = _init_linear(keys[0], input_dim, hidden_dim)
    wzs, wxs, bxs = [], [], []
    idx = 1
    for _ in range(num_layer - 1):
        wz, _ = _init_linear(keys[idx], hidden_dim, hidden_dim); idx += 1
        wx, bx = _init_linear(keys[idx], input_dim, hidden_dim); idx += 1
        wzs.append(wz); wxs.append(wx); bxs.append(bx)
    wz, _ = _init_linear(keys[idx], hidden_dim, out_dim); idx += 1
    wx, bx = _init_linear(keys[idx], input_dim, out_dim)
    wzs.append(wz); wxs.append(wx); bxs.append(bx)
    return dict(w0=w0, b0=b0, wzs=wzs, wxs=wxs, bxs=bxs)


def init_mlp(key, dim, z_dim, factor, n_layers):
    widths = [dim] + [factor] * (n_layers - 1) + [z_dim]
    keys = jax.random.split(key, n_layers)
    return [_init_linear(k, widths[i], widths[i + 1]) for i, k in enumerate(keys)]


def init_lstm(key, input_size, hidden_size):
    k1, k2, k3, k4 = jax.random.split(key, 4)
    s = 1.0 / np.sqrt(hidden_size)
    w_ih = jax.random.uniform(k1, (input_size, 4 * hidden_size), jnp.float32, -s, s)
    w_hh = jax.random.uniform(k2, (hidden_size, 4 * hidden_size), jnp.float32, -s, s)
    b_ih = jax.random.uniform(k3, (4 * hidden_size,), jnp.float32, -s, s)
    b_hh = jax.random.uniform(k4, (4 * hidden_size,), jnp.float32, -s, s)
    return dict(w_ih=w_ih, w_hh=w_hh, b=b_ih + b_hh)


# ------------------------------------- main ------------------------------------------
if __name__ == "__main__":
    # small config consistent with the module (ss_f=True path, f1dim>0 and f2dim>0)
    B, T = 4, 8                     # batch, x_length
    XDIM, UDIM = 4, 3
    F1DIM, F2DIM = 5, 6
    FACTOR, F1_LAYERS = 16, 2
    A_HID, A_LAYERS = 64, 3
    B_HID, B_LAYERS = 64, 1
    LSTM_HID = 32                   # lstm_num_layers = 1 (module default)

    root = jax.random.PRNGKey(0)
    ks = jax.random.split(root, 10)

    fc_w, fc_b = _init_linear(ks[5], LSTM_HID, F2DIM)
    params = dict(
        alpha=init_icnn(ks[0], UDIM, A_HID, A_LAYERS, out_dim=1),
        beta=init_icnn(ks[1], UDIM, B_HID, B_LAYERS, out_dim=F1DIM + F2DIM),
        f1=dict(
            common=init_mlp(ks[2], XDIM, F1DIM, factor=64, n_layers=3),
            next=init_mlp(ks[3], F1DIM, F1DIM, factor=FACTOR, n_layers=F1_LAYERS),
        ),
        f2=dict(**init_lstm(ks[4], XDIM, LSTM_HID), fc_w=fc_w, fc_b=fc_b),
    )

    # pack all weights into the single-DMA slab ONCE (outside the per-call path)
    slab, meta = pack_ccq_params(params)

    z = jax.random.normal(ks[6], (B, UDIM), jnp.float32)
    x = jax.random.normal(ks[7], (B, T, XDIM), jnp.float32)

    fwd = jax.jit(functools.partial(ccq_forward, meta=meta))
    alpha, beta, f = fwd(slab, z, x)
    jax.block_until_ready((alpha, beta, f))

    assert alpha.shape == (B, 1)
    assert beta.shape == (B, F1DIM + F2DIM)
    assert f.shape == (B, F1DIM + F2DIM)
    assert all(bool(jnp.isfinite(a).all()) for a in (alpha, beta, f))
    print("KERNEL_OK")
</pallas_src>

<mosaic_0001>
module attributes {stable_mosaic.version = 11 : i64} {
  func.func @_fused_kernel(%arg0: i32, %arg1: memref<752x384xf32, #tpu.memory_space<vmem>>, %arg2: memref<8x3xf32, #tpu.memory_space<vmem>>, %arg3: memref<64x4xf32, #tpu.memory_space<vmem>>, %arg4: memref<8x128xf32, #tpu.memory_space<vmem>>) attributes {dimension_semantics = [#tpu.dimension_semantics<arbitrary>], iteration_bounds = array<i64: 1>, scalar_prefetch = 0 : i64, scratch_operands = 0 : i64, tpu.core_type = #tpu.core_type<tc>, window_params = [{pipeline_mode = #tpu.pipeline_mode<synchronous>, transform_indices = @transform_0, window_bounds = array<i64: 752, 384>}, {pipeline_mode = #tpu.pipeline_mode<synchronous>, transform_indices = @transform_1, window_bounds = array<i64: 8, 3>}, {pipeline_mode = #tpu.pipeline_mode<synchronous>, transform_indices = @transform_2, window_bounds = array<i64: 64, 4>}, {pipeline_mode = #tpu.pipeline_mode<synchronous>, transform_indices = @transform_3, window_bounds = array<i64: 8, 128>}]} {
    %c0 = arith.constant 0 : index
    %c0_0 = arith.constant 0 : index
    %0 = vector.load %arg2[%c0, %c0_0] : memref<8x3xf32, #tpu.memory_space<vmem>>, vector<8x3xf32>
    %c0_1 = arith.constant 0 : index
    %c0_2 = arith.constant 0 : index
    %1 = vector.load %arg3[%c0_1, %c0_2] : memref<64x4xf32, #tpu.memory_space<vmem>>, vector<64x4xf32>
    %c0_3 = arith.constant 0 : index
    %c0_4 = arith.constant 0 : index
    %2 = vector.load %arg1[%c0_3, %c0_4] : memref<752x384xf32, #tpu.memory_space<vmem>>, vector<3x268xf32>
    %3 = arith.truncf %2 : vector<3x268xf32> to vector<3x268xbf16>
    %4 = arith.truncf %0 : vector<8x3xf32> to vector<8x3xbf16>
    %cst = arith.constant dense<0.000000e+00> : vector<8x268xf32>
    %5 = tpu.matmul %4, %3, %cst {dimension_numbers = #tpu.dot_dimension_numbers<[1], [0], [0], [1], [0, 0, 1, 1], [], []>} : vector<8x3xbf16>, vector<3x268xbf16>, vector<8x268xf32> -> vector<8x268xf32>
    %c8 = arith.constant 8 : index
    %c0_5 = arith.constant 0 : index
    %6 = vector.load %arg1[%c8, %c0_5] : memref<752x384xf32, #tpu.memory_space<vmem>>, vector<1x268xf32>
    %7 = vector.broadcast %6 : vector<1x268xf32> to vector<8x268xf32>
    %8 = arith.addf %5, %7 : vector<8x268xf32>
    %9 = vector.extract_strided_slice %8 {offsets = [0, 0], sizes = [8, 128], strides = [1, 1]} : vector<8x268xf32> to vector<8x128xf32>
    %cst_6 = arith.constant 0.000000e+00 : f32
    %10 = vector.broadcast %cst_6 : f32 to vector<8x128xf32>
    %11 = arith.cmpf ogt, %9, %10 : vector<8x128xf32>
    %cst_7 = arith.constant 0.000000e+00 : f32
    %12 = vector.broadcast %cst_7 : f32 to vector<8x128xf32>
    %13 = arith.minimumf %9, %12 : vector<8x128xf32>
    %14 = math.exp %13 : vector<8x128xf32>
    %cst_8 = arith.constant 1.000000e+00 : f32
    %15 = vector.broadcast %cst_8 : f32 to vector<8x128xf32>
    %16 = arith.subf %14, %15 : vector<8x128xf32>
    %17 = arith.select %11, %9, %16 : vector<8x128xi1>, vector<8x128xf32>
    %18 = vector.extract_strided_slice %17 {offsets = [0, 0], sizes = [8, 64], strides = [1, 1]} : vector<8x128xf32> to vector<8x64xf32>
    %19 = vector.extract_strided_slice %17 {offsets = [0, 64], sizes = [8, 64], strides = [1, 1]} : vector<8x128xf32> to vector<8x64xf32>
    %20 = vector.extract_strided_slice %8 {offsets = [0, 128], sizes = [8, 64], strides = [1, 1]} : vector<8x268xf32> to vector<8x64xf32>
    %21 = vector.extract_strided_slice %8 {offsets = [0, 192], sizes = [8, 64], strides = [1, 1]} : vector<8x268xf32> to vector<8x64xf32>
    %22 = vector.extract_strided_slice %8 {offsets = [0, 256], sizes = [8, 1], strides = [1, 1]} : vector<8x268xf32> to vector<8x1xf32>
    %23 = vector.extract_strided_slice %8 {offsets = [0, 257], sizes = [8, 11], strides = [1, 1]} : vector<8x268xf32> to vector<8x11xf32>
    %24 = arith.mulf %0, %0 : vector<8x3xf32>
    %cst_9 = arith.constant dense<0.000000e+00> : vector<8xf32>
    %25 = vector.multi_reduction <add>, %24, %cst_9 [1] : vector<8x3xf32> to vector<8xf32>
    %26 = vector.shape_cast %25 : vector<8xf32> to vector<8x1xf32>
    %cst_10 = arith.constant 5.000000e-01 : f32
    %27 = vector.broadcast %cst_10 : f32 to vector<8x1xf32>
    %28 = arith.mulf %27, %26 : vector<8x1xf32>
    %c16 = arith.constant 16 : index
    %c0_11 = arith.constant 0 : index
    %29 = vector.load %arg1[%c16, %c0_11] : memref<752x384xf32, #tpu.memory_space<vmem>>, vector<64x64xf32>
    %30 = arith.truncf %29 : vector<64x64xf32> to vector<64x64xbf16>
    %31 = arith.truncf %18 : vector<8x64xf32> to vector<8x64xbf16>
    %cst_12 = arith.constant dense<0.000000e+00> : vector<8x64xf32>
    %32 = tpu.matmul %31, %30, %cst_12 {dimension_numbers = #tpu.dot_dimension_numbers<[1], [0], [0], [1], [0, 0, 1, 1], [], []>} : vector<8x64xbf16>, vector<64x64xbf16>, vector<8x64xf32> -> vector<8x64xf32>
    %33 = arith.addf %32, %20 : vector<8x64xf32>
    %cst_13 = arith.constant 0.000000e+00 : f32
    %34 = vector.broadcast %cst_13 : f32 to vector<8x64xf32>
    %35 = arith.cmpf ogt, %33, %34 : vector<8x64xf32>
    %cst_14 = arith.constant 0.000000e+00 : f32
    %36 = vector.broadcast %cst_14 : f32 to vector<8x64xf32>
    %37 = arith.minimumf %33, %36 : vector<8x64xf32>
    %38 = math.exp %37 : vector<8x64xf32>
    %cst_15 = arith.constant 1.000000e+00 : f32
    %39 = vector.broadcast %cst_15 : f32 to vector<8x64xf32>
    %40 = arith.subf %38, %39 : vector<8x64xf32>
    %41 = arith.select %35, %33, %40 : vector<8x64xi1>, vector<8x64xf32>
    %c80 = arith.constant 80 : index
    %c0_16 = arith.constant 0 : index
    %42 = vector.load %arg1[%c80, %c0_16] : memref<752x384xf32, #tpu.memory_space<vmem>>, vector<64x64xf32>
    %43 = arith.truncf %42 : vector<64x64xf32> to vector<64x64xbf16>
    %44 = arith.truncf %41 : vector<8x64xf32> to vector<8x64xbf16>
    %cst_17 = arith.constant dense<0.000000e+00> : vector<8x64xf32>
    %45 = tpu.matmul %44, %43, %cst_17 {dimension_numbers = #tpu.dot_dimension_numbers<[1], [0], [0], [1], [0, 0, 1, 1], [], []>} : vector<8x64xbf16>, vector<64x64xbf16>, vector<8x64xf32> -> vector<8x64xf32>
    %46 = arith.addf %45, %21 : vector<8x64xf32>
    %cst_18 = arith.constant 0.000000e+00 : f32
    %47 = vector.broadcast %cst_18 : f32 to vector<8x64xf32>
    %48 = arith.cmpf ogt, %46, %47 : vector<8x64xf32>
    %cst_19 = arith.constant 0.000000e+00 : f32
    %49 = vector.broadcast %cst_19 : f32 to vector<8x64xf32>
    %50 = arith.minimumf %46, %49 : vector<8x64xf32>
    %51 = math.exp %50 : vector<8x64xf32>
    %cst_20 = arith.constant 1.000000e+00 : f32
    %52 = vector.broadcast %cst_20 : f32 to vector<8x64xf32>
    %53 = arith.subf %51, %52 : vector<8x64xf32>
    %54 = arith.select %48, %46, %53 : vector<8x64xi1>, vector<8x64xf32>
    %c144 = arith.constant 144 : index
    %c0_21 = arith.constant 0 : index
    %55 = vector.load %arg1[%c144, %c0_21] : memref<752x384xf32, #tpu.memory_space<vmem>>, vector<64x1xf32>
    %56 = arith.truncf %55 : vector<64x1xf32> to vector<64x1xbf16>
    %57 = arith.truncf %54 : vector<8x64xf32> to vector<8x64xbf16>
    %cst_22 = arith.constant dense<0.000000e+00> : vector<8x1xf32>
    %58 = tpu.matmul %57, %56, %cst_22 {dimension_numbers = #tpu.dot_dimension_numbers<[1], [0], [0], [1], [0, 0, 1, 1], [], []>} : vector<8x64xbf16>, vector<64x1xbf16>, vector<8x1xf32> -> vector<8x1xf32>
    %59 = arith.addf %58, %22 : vector<8x1xf32>
    %60 = arith.addf %59, %28 : vector<8x1xf32>
    %c208 = arith.constant 208 : index
    %c0_23 = arith.constant 0 : index
    %61 = vector.load %arg1[%c208, %c0_23] : memref<752x384xf32, #tpu.memory_space<vmem>>, vector<64x11xf32>
    %62 = arith.truncf %61 : vector<64x11xf32> to vector<64x11xbf16>
    %63 = arith.truncf %19 : vector<8x64xf32> to vector<8x64xbf16>
    %cst_24 = arith.constant dense<0.000000e+00> : vector<8x11xf32>
    %64 = tpu.matmul %63, %62, %cst_24 {dimension_numbers = #tpu.dot_dimension_numbers<[1], [0], [0], [1], [0, 0, 1, 1], [], []>} : vector<8x64xbf16>, vector<64x11xbf16>, vector<8x11xf32> -> vector<8x11xf32>
    %65 = arith.addf %64, %23 : vector<8x11xf32>
    %66 = vector.broadcast %28 : vector<8x1xf32> to vector<8x11xf32>
    %67 = arith.addf %65, %66 : vector<8x11xf32>
    %c272 = arith.constant 272 : index
    %c0_25 = arith.constant 0 : index
    %68 = vector.load %arg1[%c272, %c0_25] : memref<752x384xf32, #tpu.memory_space<vmem>>, vector<4x64xf32>
    %69 = arith.truncf %68 : vector<4x64xf32> to vector<4x64xbf16>
    %70 = arith.truncf %1 : vector<64x4xf32> to vector<64x4xbf16>
    %cst_26 = arith.constant dense<0.000000e+00> : vector<64x64xf32>
    %71 = tpu.matmul %70, %69, %cst_26 {dimension_numbers = #tpu.dot_dimension_numbers<[1], [0], [0], [1], [0, 0, 1, 1], [], []>} : vector<64x4xbf16>, vector<4x64xbf16>, vector<64x64xf32> -> vector<64x64xf32>
    %c280 = arith.constant 280 : index
    %c0_27 = arith.constant 0 : index
    %72 = vector.load %arg1[%c280, %c0_27] : memref<752x384xf32, #tpu.memory_space<vmem>>, vector<1x64xf32>
    %73 = vector.broadcast %72 : vector<1x64xf32> to vector<64x64xf32>
    %74 = arith.addf %71, %73 : vector<64x64xf32>
    %cst_28 = arith.constant 0.000000e+00 : f32
    %75 = vector.broadcast %cst_28 : f32 to vector<64x64xf32>
    %76 = arith.maximumf %74, %75 : vector<64x64xf32>
    %c288 = arith.constant 288 : index
    %c0_29 = arith.constant 0 : index
    %77 = vector.load %arg1[%c288, %c0_29] : memref<752x384xf32, #tpu.memory_space<vmem>>, vector<64x64xf32>
    %78 = arith.truncf %77 : vector<64x64xf32> to vector<64x64xbf16>
    %79 = arith.truncf %76 : vector<64x64xf32> to vector<64x64xbf16>
    %cst_30 = arith.constant dense<0.000000e+00> : vector<64x64xf32>
    %80 = tpu.matmul %79, %78, %cst_30 {dimension_numbers = #tpu.dot_dimension_numbers<[1], [0], [0], [1], [0, 0, 1, 1], [], []>} : vector<64x64xbf16>, vector<64x64xbf16>, vector<64x64xf32> -> vector<64x64xf32>
    %c352 = arith.constant 352 : index
    %c0_31 = arith.constant 0 : index
    %81 = vector.load %arg1[%c352, %c0_31] : memref<752x384xf32, #tpu.memory_space<vmem>>, vector<1x64xf32>
    %82 = vector.broadcast %81 : vector<1x64xf32> to vector<64x64xf32>
    %83 = arith.addf %80, %82 : vector<64x64xf32>
    %cst_32 = arith.constant 0.000000e+00 : f32
    %84 = vector.broadcast %cst_32 : f32 to vector<64x64xf32>
    %85 = arith.maximumf %83, %84 : vector<64x64xf32>
    %c360 = arith.constant 360 : index
    %c0_33 = arith.constant 0 : index
    %86 = vector.load %arg1[%c360, %c0_33] : memref<752x384xf32, #tpu.memory_space<vmem>>, vector<64x5xf32>
    %87 = arith.truncf %86 : vector<64x5xf32> to vector<64x5xbf16>
    %88 = arith.truncf %85 : vector<64x64xf32> to vector<64x64xbf16>
    %cst_34 = arith.constant dense<0.000000e+00> : vector<64x5xf32>
    %89 = tpu.matmul %88, %87, %cst_34 {dimension_numbers = #tpu.dot_dimension_numbers<[1], [0], [0], [1], [0, 0, 1, 1], [], []>} : vector<64x64xbf16>, vector<64x5xbf16>, vector<64x5xf32> -> vector<64x5xf32>
    %c424 = arith.constant 424 : index
    %c0_35 = arith.constant 0 : index
    %90 = vector.load %arg1[%c424, %c0_35] : memref<752x384xf32, #tpu.memory_space<vmem>>, vector<1x5xf32>
    %91 = vector.broadcast %90 : vector<1x5xf32> to vector<64x5xf32>
    %92 = arith.addf %89, %91 : vector<64x5xf32>
    %93 = vector.extract_strided_slice %92 {offsets = [0, 0], sizes = [8, 5], strides = [1, 1]} : vector<64x5xf32> to vector<8x5xf32>
    %94 = vector.extract_strided_slice %92 {offsets = [8, 0], sizes = [8, 5], strides = [1, 1]} : vector<64x5xf32> to vector<8x5xf32>
    %95 = arith.addf %93, %94 : vector<8x5xf32>
    %96 = vector.extract_strided_slice %92 {offsets = [16, 0], sizes = [8, 5], strides = [1, 1]} : vector<64x5xf32> to vector<8x5xf32>
    %97 = arith.addf %95, %96 : vector<8x5xf32>
    %98 = vector.extract_strided_slice %92 {offsets = [24, 0], sizes = [8, 5], strides = [1, 1]} : vector<64x5xf32> to vector<8x5xf32>
    %99 = arith.addf %97, %98 : vector<8x5xf32>
    %100 = vector.extract_strided_slice %92 {offsets = [32, 0], sizes = [8, 5], strides = [1, 1]} : vector<64x5xf32> to vector<8x5xf32>
    %101 = arith.addf %99, %100 : vector<8x5xf32>
    %102 = vector.extract_strided_slice %92 {offsets = [40, 0], sizes = [8, 5], strides = [1, 1]} : vector<64x5xf32> to vector<8x5xf32>
    %103 = arith.addf %101, %102 : vector<8x5xf32>
    %104 = vector.extract_strided_slice %92 {offsets = [48, 0], sizes = [8, 5], strides = [1, 1]} : vector<64x5xf32> to vector<8x5xf32>
    %105 = arith.addf %103, %104 : vector<8x5xf32>
    %106 = vector.extract_strided_slice %92 {offsets = [56, 0], sizes = [8, 5], strides = [1, 1]} : vector<64x5xf32> to vector<8x5xf32>
    %107 = arith.addf %105, %106 : vector<8x5xf32>
    %cst_36 = arith.constant 1.250000e-01 : f32
    %108 = vector.broadcast %cst_36 : f32 to vector<8x5xf32>
    %109 = arith.mulf %107, %108 : vector<8x5xf32>
    %c432 = arith.constant 432 : index
    %c0_37 = arith.constant 0 : index
    %110 = vector.load %arg1[%c432, %c0_37] : memref<752x384xf32, #tpu.memory_space<vmem>>, vector<5x16xf32>
    %111 = arith.truncf %110 : vector<5x16xf32> to vector<5x16xbf16>
    %112 = arith.truncf %109 : vector<8x5xf32> to vector<8x5xbf16>
    %cst_38 = arith.constant dense<0.000000e+00> : vector<8x16xf32>
    %113 = tpu.matmul %112, %111, %cst_38 {dimension_numbers = #tpu.dot_dimension_numbers<[1], [0], [0], [1], [0, 0, 1, 1], [], []>} : vector<8x5xbf16>, vector<5x16xbf16>, vector<8x16xf32> -> vector<8x16xf32>
    %c440 = arith.constant 440 : index
    %c0_39 = arith.constant 0 : index
    %114 = vector.load %arg1[%c440, %c0_39] : memref<752x384xf32, #tpu.memory_space<vmem>>, vector<1x16xf32>
    %115 = vector.broadcast %114 : vector<1x16xf32> to vector<8x16xf32>
    %116 = arith.addf %113, %115 : vector<8x16xf32>
    %cst_40 = arith.constant 0.000000e+00 : f32
    %117 = vector.broadcast %cst_40 : f32 to vector<8x16xf32>
    %118 = arith.maximumf %116, %117 : vector<8x16xf32>
    %c448 = arith.constant 448 : index
    %c0_41 = arith.constant 0 : index
    %119 = vector.load %arg1[%c448, %c0_41] : memref<752x384xf32, #tpu.memory_space<vmem>>, vector<16x5xf32>
    %120 = arith.truncf %119 : vector<16x5xf32> to vector<16x5xbf16>
    %121 = arith.truncf %118 : vector<8x16xf32> to vector<8x16xbf16>
    %cst_42 = arith.constant dense<0.000000e+00> : vector<8x5xf32>
    %122 = tpu.matmul %121, %120, %cst_42 {dimension_numbers = #tpu.dot_dimension_numbers<[1], [0], [0], [1], [0, 0, 1, 1], [], []>} : vector<8x16xbf16>, vector<16x5xbf16>, vector<8x5xf32> -> vector<8x5xf32>
    %c464 = arith.constant 464 : index
    %c0_43 = arith.constant 0 : index
    %123 = vector.load %arg1[%c464, %c0_43] : memref<752x384xf32, #tpu.memory_space<vmem>>, vector<1x5xf32>
    %124 = vector.broadcast %123 : vector<1x5xf32> to vector<8x5xf32>
    %125 = arith.addf %122, %124 : vector<8x5xf32>
    %126 = tpu.iota {dimensions = array<i32: 0>} : vector<8x5xi32>
    %c4_i32 = arith.constant 4 : i32
    %127 = vector.broadcast %c4_i32 : i32 to vector<8x5xi32>
    %128 = arith.cmpi slt, %126, %127 : vector<8x5xi32>
    %129 = arith.extui %128 : vector<8x5xi1> to vector<8x5xi32>
    %130 = arith.sitofp %129 : vector<8x5xi32> to vector<8x5xf32>
    %131 = arith.mulf %125, %130 : vector<8x5xf32>
    %cst_44 = arith.constant dense<0.000000e+00> : vector<5xf32>
    %132 = vector.multi_reduction <add>, %131, %cst_44 [0] : vector<8x5xf32> to vector<5xf32>
    %133 = vector.shape_cast %132 : vector<5xf32> to vector<1x5xf32>
    %cst_45 = arith.constant 2.500000e-01 : f32
    %134 = vector.broadcast %cst_45 : f32 to vector<1x5xf32>
    %135 = arith.mulf %133, %134 : vector<1x5xf32>
    %136 = vector.broadcast %135 : vector<1x5xf32> to vector<8x5xf32>
    %137 = arith.subf %125, %136 : vector<8x5xf32>
    %138 = arith.mulf %137, %130 : vector<8x5xf32>
    %139 = arith.mulf %138, %138 : vector<8x5xf32>
    %cst_46 = arith.constant dense<0.000000e+00> : vector<5xf32>
    %140 = vector.multi_reduction <add>, %139, %cst_46 [0] : vector<8x5xf32> to vector<5xf32>
    %141 = vector.shape_cast %140 : vector<5xf32> to vector<1x5xf32>
    %cst_47 = arith.constant 2.500000e-01 : f32
    %142 = vector.broadcast %cst_47 : f32 to vector<1x5xf32>
    %143 = arith.mulf %141, %142 : vector<1x5xf32>
    %144 = vector.broadcast %135 : vector<1x5xf32> to vector<8x5xf32>
    %145 = arith.subf %125, %144 : vector<8x5xf32>
    %cst_48 = arith.constant 9.99999974E-6 : f32
    %146 = vector.broadcast %cst_48 : f32 to vector<1x5xf32>
    %147 = arith.addf %143, %146 : vector<1x5xf32>
    %148 = math.rsqrt %147 : vector<1x5xf32>
    %149 = vector.broadcast %148 : vector<1x5xf32> to vector<8x5xf32>
    %150 = arith.mulf %145, %149 : vector<8x5xf32>
    %c472 = arith.constant 472 : index
    %c0_49 = arith.constant 0 : index
    %151 = vector.load %arg1[%c472, %c0_49] : memref<752x384xf32, #tpu.memory_space<vmem>>, vector<4x128xf32>
    %152 = arith.truncf %151 : vector<4x128xf32> to vector<4x128xbf16>
    %153 = arith.truncf %1 : vector<64x4xf32> to vector<64x4xbf16>
    %cst_50 = arith.constant dense<0.000000e+00> : vector<64x128xf32>
    %154 = tpu.matmul %153, %152, %cst_50 {dimension_numbers = #tpu.dot_dimension_numbers<[1], [0], [0], [1], [0, 0, 1, 1], [], []>} : vector<64x4xbf16>, vector<4x128xbf16>, vector<64x128xf32> -> vector<64x128xf32>
    %c480 = arith.constant 480 : index
    %c0_51 = arith.constant 0 : index
    %155 = vector.load %arg1[%c480, %c0_51] : memref<752x384xf32, #tpu.memory_space<vmem>>, vector<1x128xf32>
    %156 = vector.broadcast %155 : vector<1x128xf32> to vector<64x128xf32>
    %157 = arith.addf %154, %156 : vector<64x128xf32>
    %c488 = arith.constant 488 : index
    %c0_52 = arith.constant 0 : index
    %158 = vector.load %arg1[%c488, %c0_52] : memref<752x384xf32, #tpu.memory_space<vmem>>, vector<128x128xf32>
    %159 = arith.truncf %158 : vector<128x128xf32> to vector<128x128xbf16>
    %160 = tpu.iota {dimensions = array<i32: 1>} : vector<8x128xi32>
    %c64_i32 = arith.constant 64 : i32
    %161 = vector.broadcast %c64_i32 : i32 to vector<8x128xi32>
    %162 = arith.cmpi sge, %160, %161 : vector<8x128xi32>
    %c96_i32 = arith.constant 96 : i32
    %163 = vector.broadcast %c96_i32 : i32 to vector<8x128xi32>
    %164 = arith.cmpi slt, %160, %163 : vector<8x128xi32>
    %165 = arith.andi %162, %164 : vector<8x128xi1>
    %cst_53 = arith.constant 0.000000e+00 : f32
    %166 = vector.broadcast %cst_53 : f32 to vector<8x128xf32>
    %cst_54 = arith.constant 0.000000e+00 : f32
    %167 = vector.broadcast %cst_54 : f32 to vector<8x128xf32>
    %168 = vector.extract_strided_slice %157 {offsets = [0, 0], sizes = [8, 128], strides = [1, 1]} : vector<64x128xf32> to vector<8x128xf32>
    %169 = arith.truncf %166 : vector<8x128xf32> to vector<8x128xbf16>
    %cst_55 = arith.constant dense<0.000000e+00> : vector<8x128xf32>
    %170 = tpu.matmul %169, %159, %cst_55 {dimension_numbers = #tpu.dot_dimension_numbers<[1], [0], [0], [1], [0, 0, 1, 1], [], []>} : vector<8x128xbf16>, vector<128x128xbf16>, vector<8x128xf32> -> vector<8x128xf32>
    %171 = arith.addf %168, %170 : vector<8x128xf32>
    %172 = math.tanh %171 : vector<8x128xf32>
    %173 = arith.negf %171 : vector<8x128xf32>
    %174 = math.exp %173 : vector<8x128xf32>
    %cst_56 = arith.constant 1.000000e+00 : f32
    %175 = vector.broadcast %cst_56 : f32 to vector<8x128xf32>
    %176 = arith.addf %175, %174 : vector<8x128xf32>
    %177 = arith.divf %175, %176 : vector<8x128xf32>
    %178 = arith.select %165, %172, %177 : vector<8x128xi1>, vector<8x128xf32>
    %c64_i32_57 = arith.constant 64 : i32
    %179 = tpu.dynamic_rotate %178 by %c64_i32_57 dim 1 : vector<8x128xf32>, i32 -> vector<8x128xf32>
    %180 = arith.mulf %178, %179 : vector<8x128xf32>
    %181 = arith.mulf %178, %167 : vector<8x128xf32>
    %c32_i32 = arith.constant 32 : i32
    %182 = tpu.dynamic_rotate %180 by %c32_i32 dim 1 : vector<8x128xf32>, i32 -> vector<8x128xf32>
    %183 = arith.addf %181, %182 : vector<8x128xf32>
    %184 = math.tanh %183 : vector<8x128xf32>
    %c64_i32_58 = arith.constant 64 : i32
    %185 = tpu.dynamic_rotate %184 by %c64_i32_58 dim 1 : vector<8x128xf32>, i32 -> vector<8x128xf32>
    %186 = arith.mulf %178, %185 : vector<8x128xf32>
    %187 = vector.extract_strided_slice %157 {offsets = [8, 0], sizes = [8, 128], strides = [1, 1]} : vector<64x128xf32> to vector<8x128xf32>
    %188 = arith.truncf %186 : vector<8x128xf32> to vector<8x128xbf16>
    %cst_59 = arith.constant dense<0.000000e+00> : vector<8x128xf32>
    %189 = tpu.matmul %188, %159, %cst_59 {dimension_numbers = #tpu.dot_dimension_numbers<[1], [0], [0], [1], [0, 0, 1, 1], [], []>} : vector<8x128xbf16>, vector<128x128xbf16>, vector<8x128xf32> -> vector<8x128xf32>
    %190 = arith.addf %187, %189 : vector<8x128xf32>
    %191 = math.tanh %190 : vector<8x128xf32>
    %192 = arith.negf %190 : vector<8x128xf32>
    %193 = math.exp %192 : vector<8x128xf32>
    %cst_60 = arith.constant 1.000000e+00 : f32
    %194 = vector.broadcast %cst_60 : f32 to vector<8x128xf32>
    %195 = arith.addf %194, %193 : vector<8x128xf32>
    %196 = arith.divf %194, %195 : vector<8x128xf32>
    %197 = arith.select %165, %191, %196 : vector<8x128xi1>, vector<8x128xf32>
    %c64_i32_61 = arith.constant 64 : i32
    %198 = tpu.dynamic_rotate %197 by %c64_i32_61 dim 1 : vector<8x128xf32>, i32 -> vector<8x128xf32>
    %199 = arith.mulf %197, %198 : vector<8x128xf32>
    %200 = arith.mulf %197, %183 : vector<8x128xf32>
    %c32_i32_62 = arith.constant 32 : i32
    %201 = tpu.dynamic_rotate %199 by %c32_i32_62 dim 1 : vector<8x128xf32>, i32 -> vector<8x128xf32>
    %202 = arith.addf %200, %201 : vector<8x128xf32>
    %203 = math.tanh %202 : vector<8x128xf32>
    %c64_i32_63 = arith.constant 64 : i32
    %204 = tpu.dynamic_rotate %203 by %c64_i32_63 dim 1 : vector<8x128xf32>, i32 -> vector<8x128xf32>
    %205 = arith.mulf %197, %204 : vector<8x128xf32>
    %206 = vector.extract_strided_slice %157 {offsets = [16, 0], sizes = [8, 128], strides = [1, 1]} : vector<64x128xf32> to vector<8x128xf32>
    %207 = arith.truncf %205 : vector<8x128xf32> to vector<8x128xbf16>
    %cst_64 = arith.constant dense<0.000000e+00> : vector<8x128xf32>
    %208 = tpu.matmul %207, %159, %cst_64 {dimension_numbers = #tpu.dot_dimension_numbers<[1], [0], [0], [1], [0, 0, 1, 1], [], []>} : vector<8x128xbf16>, vector<128x128xbf16>, vector<8x128xf32> -> vector<8x128xf32>
    %209 = arith.addf %206, %208 : vector<8x128xf32>
    %210 = math.tanh %209 : vector<8x128xf32>
    %211 = arith.negf %209 : vector<8x128xf32>
    %212 = math.exp %211 : vector<8x128xf32>
    %cst_65 = arith.constant 1.000000e+00 : f32
    %213 = vector.broadcast %cst_65 : f32 to vector<8x128xf32>
    %214 = arith.addf %213, %212 : vector<8x128xf32>
    %215 = arith.divf %213, %214 : vector<8x128xf32>
    %216 = arith.select %165, %210, %215 : vector<8x128xi1>, vector<8x128xf32>
    %c64_i32_66 = arith.constant 64 : i32
    %217 = tpu.dynamic_rotate %216 by %c64_i32_66 dim 1 : vector<8x128xf32>, i32 -> vector<8x128xf32>
    %218 = arith.mulf %216, %217 : vector<8x128xf32>
    %219 = arith.mulf %216, %202 : vector<8x128xf32>
    %c32_i32_67 = arith.constant 32 : i32
    %220 = tpu.dynamic_rotate %218 by %c32_i32_67 dim 1 : vector<8x128xf32>, i32 -> vector<8x128xf32>
    %221 = arith.addf %219, %220 : vector<8x128xf32>
    %222 = math.tanh %221 : vector<8x128xf32>
    %c64_i32_68 = arith.constant 64 : i32
    %223 = tpu.dynamic_rotate %222 by %c64_i32_68 dim 1 : vector<8x128xf32>, i32 -> vector<8x128xf32>
    %224 = arith.mulf %216, %223 : vector<8x128xf32>
    %225 = vector.extract_strided_slice %157 {offsets = [24, 0], sizes = [8, 128], strides = [1, 1]} : vector<64x128xf32> to vector<8x128xf32>
    %226 = arith.truncf %224 : vector<8x128xf32> to vector<8x128xbf16>
    %cst_69 = arith.constant dense<0.000000e+00> : vector<8x128xf32>
    %227 = tpu.matmul %226, %159, %cst_69 {dimension_numbers = #tpu.dot_dimension_numbers<[1], [0], [0], [1], [0, 0, 1, 1], [], []>} : vector<8x128xbf16>, vector<128x128xbf16>, vector<8x128xf32> -> vector<8x128xf32>
    %228 = arith.addf %225, %227 : vector<8x128xf32>
    %229 = math.tanh %228 : vector<8x128xf32>
    %230 = arith.negf %228 : vector<8x128xf32>
    %231 = math.exp %230 : vector<8x128xf32>
    %cst_70 = arith.constant 1.000000e+00 : f32
    %232 = vector.broadcast %cst_70 : f32 to vector<8x128xf32>
    %233 = arith.addf %232, %231 : vector<8x128xf32>
    %234 = arith.divf %232, %233 : vector<8x128xf32>
    %235 = arith.select %165, %229, %234 : vector<8x128xi1>, vector<8x128xf32>
    %c64_i32_71 = arith.constant 64 : i32
    %236 = tpu.dynamic_rotate %235 by %c64_i32_71 dim 1 : vector<8x128xf32>, i32 -> vector<8x128xf32>
    %237 = arith.mulf %235, %236 : vector<8x128xf32>
    %238 = arith.mulf %235, %221 : vector<8x128xf32>
    %c32_i32_72 = arith.constant 32 : i32
    %239 = tpu.dynamic_rotate %237 by %c32_i32_72 dim 1 : vector<8x128xf32>, i32 -> vector<8x128xf32>
    %240 = arith.addf %238, %239 : vector<8x128xf32>
    %241 = math.tanh %240 : vector<8x128xf32>
    %c64_i32_73 = arith.constant 64 : i32
    %242 = tpu.dynamic_rotate %241 by %c64_i32_73 dim 1 : vector<8x128xf32>, i32 -> vector<8x128xf32>
    %243 = arith.mulf %235, %242 : vector<8x128xf32>
    %244 = vector.extract_strided_slice %157 {offsets = [32, 0], sizes = [8, 128], strides = [1, 1]} : vector<64x128xf32> to vector<8x128xf32>
    %245 = arith.truncf %243 : vector<8x128xf32> to vector<8x128xbf16>
    %cst_74 = arith.constant dense<0.000000e+00> : vector<8x128xf32>
    %246 = tpu.matmul %245, %159, %cst_74 {dimension_numbers = #tpu.dot_dimension_numbers<[1], [0], [0], [1], [0, 0, 1, 1], [], []>} : vector<8x128xbf16>, vector<128x128xbf16>, vector<8x128xf32> -> vector<8x128xf32>
    %247 = arith.addf %244, %246 : vector<8x128xf32>
    %248 = math.tanh %247 : vector<8x128xf32>
    %249 = arith.negf %247 : vector<8x128xf32>
    %250 = math.exp %249 : vector<8x128xf32>
    %cst_75 = arith.constant 1.000000e+00 : f32
    %251 = vector.broadcast %cst_75 : f32 to vector<8x128xf32>
    %252 = arith.addf %251, %250 : vector<8x128xf32>
    %253 = arith.divf %251, %252 : vector<8x128xf32>
    %254 = arith.select %165, %248, %253 : vector<8x128xi1>, vector<8x128xf32>
    %c64_i32_76 = arith.constant 64 : i32
    %255 = tpu.dynamic_rotate %254 by %c64_i32_76 dim 1 : vector<8x128xf32>, i32 -> vector<8x128xf32>
    %256 = arith.mulf %254, %255 : vector<8x128xf32>
    %257 = arith.mulf %254, %240 : vector<8x128xf32>
    %c32_i32_77 = arith.constant 32 : i32
    %258 = tpu.dynamic_rotate %256 by %c32_i32_77 dim 1 : vector<8x128xf32>, i32 -> vector<8x128xf32>
    %259 = arith.addf %257, %258 : vector<8x128xf32>
    %260 = math.tanh %259 : vector<8x128xf32>
    %c64_i32_78 = arith.constant 64 : i32
    %261 = tpu.dynamic_rotate %260 by %c64_i32_78 dim 1 : vector<8x128xf32>, i32 -> vector<8x128xf32>
    %262 = arith.mulf %254, %261 : vector<8x128xf32>
    %263 = vector.extract_strided_slice %157 {offsets = [40, 0], sizes = [8, 128], strides = [1, 1]} : vector<64x128xf32> to vector<8x128xf32>
    %264 = arith.truncf %262 : vector<8x128xf32> to vector<8x128xbf16>
    %cst_79 = arith.constant dense<0.000000e+00> : vector<8x128xf32>
    %265 = tpu.matmul %264, %159, %cst_79 {dimension_numbers = #tpu.dot_dimension_numbers<[1], [0], [0], [1], [0, 0, 1, 1], [], []>} : vector<8x128xbf16>, vector<128x128xbf16>, vector<8x128xf32> -> vector<8x128xf32>
    %266 = arith.addf %263, %265 : vector<8x128xf32>
    %267 = math.tanh %266 : vector<8x128xf32>
    %268 = arith.negf %266 : vector<8x128xf32>
    %269 = math.exp %268 : vector<8x128xf32>
    %cst_80 = arith.constant 1.000000e+00 : f32
    %270 = vector.broadcast %cst_80 : f32 to vector<8x128xf32>
    %271 = arith.addf %270, %269 : vector<8x128xf32>
    %272 = arith.divf %270, %271 : vector<8x128xf32>
    %273 = arith.select %165, %267, %272 : vector<8x128xi1>, vector<8x128xf32>
    %c64_i32_81 = arith.constant 64 : i32
    %274 = tpu.dynamic_rotate %273 by %c64_i32_81 dim 1 : vector<8x128xf32>, i32 -> vector<8x128xf32>
    %275 = arith.mulf %273, %274 : vector<8x128xf32>
    %276 = arith.mulf %273, %259 : vector<8x128xf32>
    %c32_i32_82 = arith.constant 32 : i32
    %277 = tpu.dynamic_rotate %275 by %c32_i32_82 dim 1 : vector<8x128xf32>, i32 -> vector<8x128xf32>
    %278 = arith.addf %276, %277 : vector<8x128xf32>
    %279 = math.tanh %278 : vector<8x128xf32>
    %c64_i32_83 = arith.constant 64 : i32
    %280 = tpu.dynamic_rotate %279 by %c64_i32_83 dim 1 : vector<8x128xf32>, i32 -> vector<8x128xf32>
    %281 = arith.mulf %273, %280 : vector<8x128xf32>
    %282 = vector.extract_strided_slice %157 {offsets = [48, 0], sizes = [8, 128], strides = [1, 1]} : vector<64x128xf32> to vector<8x128xf32>
    %283 = arith.truncf %281 : vector<8x128xf32> to vector<8x128xbf16>
    %cst_84 = arith.constant dense<0.000000e+00> : vector<8x128xf32>
    %284 = tpu.matmul %283, %159, %cst_84 {dimension_numbers = #tpu.dot_dimension_numbers<[1], [0], [0], [1], [0, 0, 1, 1], [], []>} : vector<8x128xbf16>, vector<128x128xbf16>, vector<8x128xf32> -> vector<8x128xf32>
    %285 = arith.addf %282, %284 : vector<8x128xf32>
    %286 = math.tanh %285 : vector<8x128xf32>
    %287 = arith.negf %285 : vector<8x128xf32>
    %288 = math.exp %287 : vector<8x128xf32>
    %cst_85 = arith.constant 1.000000e+00 : f32
    %289 = vector.broadcast %cst_85 : f32 to vector<8x128xf32>
    %290 = arith.addf %289, %288 : vector<8x128xf32>
    %291 = arith.divf %289, %290 : vector<8x128xf32>
    %292 = arith.select %165, %286, %291 : vector<8x128xi1>, vector<8x128xf32>
    %c64_i32_86 = arith.constant 64 : i32
    %293 = tpu.dynamic_rotate %292 by %c64_i32_86 dim 1 : vector<8x128xf32>, i32 -> vector<8x128xf32>
    %294 = arith.mulf %292, %293 : vector<8x128xf32>
    %295 = arith.mulf %292, %278 : vector<8x128xf32>
    %c32_i32_87 = arith.constant 32 : i32
    %296 = tpu.dynamic_rotate %294 by %c32_i32_87 dim 1 : vector<8x128xf32>, i32 -> vector<8x128xf32>
    %297 = arith.addf %295, %296 : vector<8x128xf32>
    %298 = math.tanh %297 : vector<8x128xf32>
    %c64_i32_88 = arith.constant 64 : i32
    %299 = tpu.dynamic_rotate %298 by %c64_i32_88 dim 1 : vector<8x128xf32>, i32 -> vector<8x128xf32>
    %300 = arith.mulf %292, %299 : vector<8x128xf32>
    %301 = vector.extract_strided_slice %157 {offsets = [56, 0], sizes = [8, 128], strides = [1, 1]} : vector<64x128xf32> to vector<8x128xf32>
    %302 = arith.truncf %300 : vector<8x128xf32> to vector<8x128xbf16>
    %cst_89 = arith.constant dense<0.000000e+00> : vector<8x128xf32>
    %303 = tpu.matmul %302, %159, %cst_89 {dimension_numbers = #tpu.dot_dimension_numbers<[1], [0], [0], [1], [0, 0, 1, 1], [], []>} : vector<8x128xbf16>, vector<128x128xbf16>, vector<8x128xf32> -> vector<8x128xf32>
    %304 = arith.addf %301, %303 : vector<8x128xf32>
    %305 = math.tanh %304 : vector<8x128xf32>
    %306 = arith.negf %304 : vector<8x128xf32>
    %307 = math.exp %306 : vector<8x128xf32>
    %cst_90 = arith.constant 1.000000e+00 : f32
    %308 = vector.broadcast %cst_90 : f32 to vector<8x128xf32>
    %309 = arith.addf %308, %307 : vector<8x128xf32>
    %310 = arith.divf %308, %309 : vector<8x128xf32>
    %311 = arith.select %165, %305, %310 : vector<8x128xi1>, vector<8x128xf32>
    %c64_i32_91 = arith.constant 64 : i32
    %312 = tpu.dynamic_rotate %311 by %c64_i32_91 dim 1 : vector<8x128xf32>, i32 -> vector<8x128xf32>
    %313 = arith.mulf %311, %312 : vector<8x128xf32>
    %314 = arith.mulf %311, %297 : vector<8x128xf32>
    %c32_i32_92 = arith.constant 32 : i32
    %315 = tpu.dynamic_rotate %313 by %c32_i32_92 dim 1 : vector<8x128xf32>, i32 -> vector<8x128xf32>
    %316 = arith.addf %314, %315 : vector<8x128xf32>
    %317 = math.tanh %316 : vector<8x128xf32>
    %c64_i32_93 = arith.constant 64 : i32
    %318 = tpu.dynamic_rotate %317 by %c64_i32_93 dim 1 : vector<8x128xf32>, i32 -> vector<8x128xf32>
    %319 = arith.mulf %311, %318 : vector<8x128xf32>
    %c616 = arith.constant 616 : index
    %c0_94 = arith.constant 0 : index
    %320 = vector.load %arg1[%c616, %c0_94] : memref<752x384xf32, #tpu.memory_space<vmem>>, vector<128x6xf32>
    %321 = arith.truncf %320 : vector<128x6xf32> to vector<128x6xbf16>
    %322 = arith.truncf %319 : vector<8x128xf32> to vector<8x128xbf16>
    %cst_95 = arith.constant dense<0.000000e+00> : vector<8x6xf32>
    %323 = tpu.matmul %322, %321, %cst_95 {dimension_numbers = #tpu.dot_dimension_numbers<[1], [0], [0], [1], [0, 0, 1, 1], [], []>} : vector<8x128xbf16>, vector<128x6xbf16>, vector<8x6xf32> -> vector<8x6xf32>
    %c744 = arith.constant 744 : index
    %c0_96 = arith.constant 0 : index
    %324 = vector.load %arg1[%c744, %c0_96] : memref<752x384xf32, #tpu.memory_space<vmem>>, vector<1x6xf32>
    %325 = vector.broadcast %324 : vector<1x6xf32> to vector<8x6xf32>
    %326 = arith.addf %323, %325 : vector<8x6xf32>
    %327 = tpu.iota {dimensions = array<i32: 0>} : vector<8x6xi32>
    %c4_i32_97 = arith.constant 4 : i32
    %328 = vector.broadcast %c4_i32_97 : i32 to vector<8x6xi32>
    %329 = arith.cmpi slt, %327, %328 : vector<8x6xi32>
    %330 = arith.extui %329 : vector<8x6xi1> to vector<8x6xi32>
    %331 = arith.sitofp %330 : vector<8x6xi32> to vector<8x6xf32>
    %332 = arith.mulf %326, %331 : vector<8x6xf32>
    %cst_98 = arith.constant dense<0.000000e+00> : vector<6xf32>
    %333 = vector.multi_reduction <add>, %332, %cst_98 [0] : vector<8x6xf32> to vector<6xf32>
    %334 = vector.shape_cast %333 : vector<6xf32> to vector<1x6xf32>
    %cst_99 = arith.constant 2.500000e-01 : f32
    %335 = vector.broadcast %cst_99 : f32 to vector<1x6xf32>
    %336 = arith.mulf %334, %335 : vector<1x6xf32>
    %337 = vector.broadcast %336 : vector<1x6xf32> to vector<8x6xf32>
    %338 = arith.subf %326, %337 : vector<8x6xf32>
    %339 = arith.mulf %338, %331 : vector<8x6xf32>
    %340 = arith.mulf %339, %339 : vector<8x6xf32>
    %cst_100 = arith.constant dense<0.000000e+00> : vector<6xf32>
    %341 = vector.multi_reduction <add>, %340, %cst_100 [0] : vector<8x6xf32> to vector<6xf32>
    %342 = vector.shape_cast %341 : vector<6xf32> to vector<1x6xf32>
    %cst_101 = arith.constant 2.500000e-01 : f32
    %343 = vector.broadcast %cst_101 : f32 to vector<1x6xf32>
    %344 = arith.mulf %342, %343 : vector<1x6xf32>
    %345 = vector.broadcast %336 : vector<1x6xf32> to vector<8x6xf32>
    %346 = arith.subf %326, %345 : vector<8x6xf32>
    %cst_102 = arith.constant 9.99999974E-6 : f32
    %347 = vector.broadcast %cst_102 : f32 to vector<1x6xf32>
    %348 = arith.addf %344, %347 : vector<1x6xf32>
    %349 = math.rsqrt %348 : vector<1x6xf32>
    %350 = vector.broadcast %349 : vector<1x6xf32> to vector<8x6xf32>
    %351 = arith.mulf %346, %350 : vector<8x6xf32>
    %cst_103 = arith.constant 0.000000e+00 : f32
    %352 = vector.broadcast %cst_103 : f32 to vector<8x128xf32>
    %c0_104 = arith.constant 0 : index
    %c0_105 = arith.constant 0 : index
    %353 = vector.load %arg4[%c0_104, %c0_105] : memref<8x128xf32, #tpu.memory_space<vmem>>, vector<8x128xf32>
    tpu.vector_store %arg4[%c0_104, %c0_105], %352 {strides = array<i32>} : memref<8x128xf32, #tpu.memory_space<vmem>>, vector<8x128xf32>,
    %c0_106 = arith.constant 0 : index
    %c0_107 = arith.constant 0 : index
    %354 = vector.load %arg4[%c0_106, %c0_107] : memref<8x128xf32, #tpu.memory_space<vmem>>, vector<8x1xf32>
    tpu.vector_store %arg4[%c0_106, %c0_107], %60 {strides = array<i32>} : memref<8x128xf32, #tpu.memory_space<vmem>>, vector<8x1xf32>,
    %c0_108 = arith.constant 0 : index
    %c1 = arith.constant 1 : index
    %355 = vector.load %arg4[%c0_108, %c1] : memref<8x128xf32, #tpu.memory_space<vmem>>, vector<8x11xf32>
    tpu.vector_store %arg4[%c0_108, %c1], %67 {strides = array<i32>} : memref<8x128xf32, #tpu.memory_space<vmem>>, vector<8x11xf32>,
    %c0_109 = arith.constant 0 : index
    %c12 = arith.constant 12 : index
    %356 = vector.load %arg4[%c0_109, %c12] : memref<8x128xf32, #tpu.memory_space<vmem>>, vector<8x5xf32>
    tpu.vector_store %arg4[%c0_109, %c12], %150 {strides = array<i32>} : memref<8x128xf32, #tpu.memory_space<vmem>>, vector<8x5xf32>,
    %c0_110 = arith.constant 0 : index
    %c17 = arith.constant 17 : index
    %357 = vector.load %arg4[%c0_110, %c17] : memref<8x128xf32, #tpu.memory_space<vmem>>, vector<8x6xf32>
    tpu.vector_store %arg4[%c0_110, %c17], %351 {strides = array<i32>} : memref<8x128xf32, #tpu.memory_space<vmem>>, vector<8x6xf32>,
    return
  }
  func.func @transform_0(%arg0: i32) -> (i32, i32) {
    %c0_i32 = arith.constant 0 : i32
    %c0_i32_0 = arith.constant 0 : i32
    %c0_i32_1 = arith.constant 0 : i32
    return %c0_i32, %c0_i32_0 : i32, i32
  }
  func.func @transform_1(%arg0: i32) -> (i32, i32) {
    %c0_i32 = arith.constant 0 : i32
    %c0_i32_0 = arith.constant 0 : i32
    %c0_i32_1 = arith.constant 0 : i32
    return %c0_i32, %c0_i32_0 : i32, i32
  }
  func.func @transform_2(%arg0: i32) -> (i32, i32) {
    %c0_i32 = arith.constant 0 : i32
    %c0_i32_0 = arith.constant 0 : i32
    %c0_i32_1 = arith.constant 0 : i32
    return %c0_i32, %c0_i32_0 : i32, i32
  }
  func.func @transform_3(%arg0: i32) -> (i32, i32) {
    %c0_i32 = arith.constant 0 : i32
    %c0_i32_0 = arith.constant 0 : i32
    %c0_i32_1 = arith.constant 0 : i32
    return %c0_i32, %c0_i32_0 : i32, i32
  }
}

</mosaic_0001>

<llo_original>
// kernel: ccq_forward.1
$region0: #{ccq_forward.1}
  #allocation0 [shape = 'u32[]', space=smem, size = 0x4, offset = 0x4, fixed_abs, tag = 'smem constant byte address 0x4 - core index']
  #allocation1 [shape = 'u32[72,128]{1,0:T(1,128)}', space=vmem, size = 0x9000, scoped, tag = 'internal scratch']
  %s0 = inlined_call_operand.hbm [shape: f32[752,384], index: 0, kind: input, shape index: {}]
  %s1 = inlined_call_operand.vmem [shape: f32[8,3], index: 1, kind: input, shape index: {}]
  %s2 = inlined_call_operand.vmem [shape: f32[64,4], index: 2, kind: input, shape index: {}]
  %s3 = inlined_call_operand.vmem [shape: f32[8,128], index: 3, kind: output, shape index: {}]
  %s4 = sld [smem:[#allocation0]]
  $region26: #{ccq_forward.1} parent=0
    _
  %s6 = ssub.s32 1, %s4
  %s7 = scalar_select 0, %s6, %s4
  $region1: #{ccq_forward.1} parent=0
    #allocation2 [shape = 'u8[1155072]{0}', space=vmem, size = 0x11a000, scoped, tag = 'input window, operand 0, single buffered']
    #allocation3 [shape = 's32[1]{0}', space=sflag, size = 0x4, scoped, tag = 'scoped memory for ccq_forward.1']
    %8 = vsyncpa [#allocation3], 0
    // Predicated region
    $region2: #{ccq_forward.1} parent=1 // pred_check
      _
    $region3: #{ccq_forward.1} parent=1 // pred_check_branch
      %10 = sbr.rel (0) target = $region5
    $region4: #{ccq_forward.1} parent=1 // pred_region
      %12 = vsyncadd [#allocation3], 0
      %s13 = sshll.u32 %s0, 4
      %s14 = int_to_ptr.hbm [resolvable:$true] %s13
      %s15 = sshll.u32 [#allocation2], 4
      %s16 = int_to_ptr.vmem [resolvable:$true] %s15
      %21 = dma.hbm_to_vmem [thread:$0]  %s14, 36096, %s16, [#allocation3], 384, 384, 24
    $region5: #{ccq_forward.1} parent=1 // pred_fallthru
      _
    // Predicated region
    $region6: #{ccq_forward.1} parent=1 // pred_check
      _
    $region7: #{ccq_forward.1} parent=1 // pred_check_branch
      %23 = sbr.rel (0) target = $region9
    $region8: #{ccq_forward.1} parent=1 // pred_region
      _
    $region9: #{ccq_forward.1} parent=1 // pred_fallthru
      _
    // Predicated region
    $region10: #{ccq_forward.1} parent=1 // pred_check
      _
    $region11: #{ccq_forward.1} parent=1 // pred_check_branch
      %25 = sbr.rel (0) target = $region13
    $region12: #{ccq_forward.1} parent=1 // pred_region
      _
    $region13: #{ccq_forward.1} parent=1 // pred_fallthru
      _
    // Predicated region
    $region14: #{ccq_forward.1} parent=1 // pred_check
      _
    $region15: #{ccq_forward.1} parent=1 // pred_check_branch
      %27 = sbr.rel (0) target = $region17
    $region16: #{ccq_forward.1} parent=1 // pred_region
      %29 = dma.done [#allocation3], 36096
    $region17: #{ccq_forward.1} parent=1 // pred_fallthru
      _
    %v31 = vld [vmem:[%s1] sm:$0xff]
    %v32 = vld [vmem:[%s2] sm:$0xff]
    %v33 = vld [vmem:[%s2 + $0x8] sm:$0xff]
    %v34 = vld [vmem:[%s2 + $0x10] sm:$0xff]
    %v35 = vld [vmem:[%s2 + $0x18] sm:$0xff]
    %v36 = vld [vmem:[%s2 + $0x20] sm:$0xff]
    %v37 = vld [vmem:[%s2 + $0x28] sm:$0xff]
    %v38 = vld [vmem:[%s2 + $0x30] sm:$0xff]
    %v39 = vld [vmem:[%s2 + $0x38] sm:$0xff]
    %v40 = vld [vmem:[#allocation2] sm:$0x7]
    %v41 = vld [vmem:[#allocation2 + $0x8] sm:$0x7]
    %v42 = vld [vmem:[#allocation2 + $0x10] sm:$0x7]
    %v43 = vpack.c.bf16 %v40, %v40
    %v44 = vpack.c.bf16 %v41, %v41
    %v45 = vpack.c.bf16 %v42, %v42
    %v46 = vpack.c.bf16 %v31, %v31
    %s47 = scalar_lea.vmem [#allocation2], 24
    %v48 = vld [vmem:[%s47] ss:$8 sm:$0x7]
    %v50 = vperm.slane %v48, 0
    %v51 = vperm.slane %v48, 1
    %v52 = vperm.slane %v48, 2
    %vm56 = vcmask 23552
    %v58 = vsel %vm56, %v46, 0
    %vm60 = vcmask 1040384
    %vm61 = vcmask 1041408
    %v62 = vsel %vm60, 4294967295, 65535
    %v63 = vsel %vm61, %v62, 0
    %v65 = vand.u32 %v43, %v63
    %v68 = vand.u32 %v44, %v63
    %v71 = vand.u32 %v45, %v63
    %73 = vmatpush.bf16.msra.mxu0 0
    %74 = vmatpush.bf16.msra.mxu0 0
    %75 = vmatpush.bf16.msra.mxu0 0
    %76 = vmatpush.bf16.msra.mxu0 0
    %77 = vmatpush.bf16.msra.mxu0 0
    %78 = vmatpush.bf16.msra.mxu0 0
    %79 = vmatpush.bf16.msra.mxu0 0
    %80 = vmatpush.bf16.msra.mxu0 %v65
    %81 = vmatmul.bf16.gmra.mxu0 %v58
    %v82 = vpop.f32.mrf.mxu0
    %v83 = vadd.f32 %v50, %v82
    %v84 = vpop.f32.mrf.mxu0
    %85 = vdwg.mxu0
    %86 = vmatpush.bf16.msra.mxu0 0
    %87 = vmatpush.bf16.msra.mxu0 0
    %88 = vmatpush.bf16.msra.mxu0 0
    %89 = vmatpush.bf16.msra.mxu0 0
    %90 = vmatpush.bf16.msra.mxu0 0
    %91 = vmatpush.bf16.msra.mxu0 0
    %92 = vmatpush.bf16.msra.mxu0 0
    %93 = vmatpush.bf16.msra.mxu0 %v68
    %94 = vmatmul.bf16.gmra.mxu0 %v58
    %v95 = vpop.f32.mrf.mxu0
    %v96 = vadd.f32 %v51, %v95
    %v97 = vpop.f32.mrf.mxu0
    %98 = vdwg.mxu0
    %99 = vmatpush.bf16.msra.mxu0 0
    %100 = vmatpush.bf16.msra.mxu0 0
    %101 = vmatpush.bf16.msra.mxu0 0
    %102 = vmatpush.bf16.msra.mxu0 0
    %103 = vmatpush.bf16.msra.mxu0 0
    %104 = vmatpush.bf16.msra.mxu0 0
    %105 = vmatpush.bf16.msra.mxu0 0
    %106 = vmatpush.bf16.msra.mxu0 %v71
    %107 = vmatmul.bf16.gmra.mxu0 %v58
    %v108 = vpop.f32.mrf.mxu0
    %v109 = vadd.f32 %v52, %v108
    %v110 = vpop.f32.mrf.mxu0
    %111 = vdwg.mxu0
    %vm112 = vcmp.gt.f32.partialorder %v83, 0.0
    %v113 = vmin.f32 %v83, 0.0
    %v114 = vmul.f32 %v113, 1.442695
    %v115 = vpow.pop %v114
    %v116 = vsub.f32 %v115, 1.0
    %v117 = vsel %vm112, %v83, %v116
    %v118 = vmul.f32 %v31, %v31
    %v119 = vsel %vm56, %v118, 0.0
    %120 = vadd.xlane.f32.xlu0 %v119
    %v121 = vpop.xlane.xlu0 %120
    %v122 = vmul.f32 %v121, 0.5
    %v123 = vld [vmem:[#allocation2 + $0x30] sm:$0xff]
    %v124 = vld [vmem:[#allocation2 + $0x48] sm:$0xff]
    %v125 = vld [vmem:[#allocation2 + $0x60] sm:$0xff]
    %v126 = vld [vmem:[#allocation2 + $0x78] sm:$0xff]
    %v127 = vld [vmem:[#allocation2 + $0x90] sm:$0xff]
    %v128 = vld [vmem:[#allocation2 + $0xa8] sm:$0xff]
    %v129 = vld [vmem:[#allocation2 + $0xc0] sm:$0xff]
    %v130 = vld [vmem:[#allocation2 + $0xd8] sm:$0xff]
    %v131 = vpack.c.bf16 %v124, %v123
    %v132 = vpack.c.bf16 %v126, %v125
    %v133 = vpack.c.bf16 %v128, %v127
    %v134 = vpack.c.bf16 %v130, %v129
    %v135 = vpack.c.bf16 %v117, %v117
    %vm136 = vcmask 523264
    %v138 = vsel %vm136, %v135, 0
    %140 = vmatpush.bf16.msra.mxu0 0
    %141 = vmatpush.bf16.msra.mxu0 0
    %142 = vmatpush.bf16.msra.mxu0 0
    %143 = vmatpush.bf16.msra.mxu0 0
    %144 = vmatpush.bf16.msra.mxu0 %v134
    %145 = vmatpush.bf16.msra.mxu0 %v133
    %146 = vmatpush.bf16.msra.mxu0 %v132
    %147 = vmatpush.bf16.msra.mxu0 %v131
    %148 = vmatmul.bf16.gmra.mxu0 %v138
    %v149 = vpop.f32.mrf.mxu0
    %v150 = vadd.f32 %v96, %v149
    %v151 = vpop.f32.mrf.mxu0
    %152 = vdwg.mxu0
    %vm153 = vcmp.gt.f32.partialorder %v150, 0.0
    %v154 = vmin.f32 %v150, 0.0
    %v155 = vmul.f32 %v154, 1.442695
    %v156 = vpow.pop %v155
    %v157 = vsub.f32 %v156, 1.0
    %v158 = vsel %vm153, %v150, %v157
    %v159 = vld [vmem:[#allocation2 + $0xf0] sm:$0xff]
    %v160 = vld [vmem:[#allocation2 + $0x108] sm:$0xff]
    %v161 = vld [vmem:[#allocation2 + $0x120] sm:$0xff]
    %v162 = vld [vmem:[#allocation2 + $0x138] sm:$0xff]
    %v163 = vld [vmem:[#allocation2 + $0x150] sm:$0xff]
    %v164 = vld [vmem:[#allocation2 + $0x168] sm:$0xff]
    %v165 = vld [vmem:[#allocation2 + $0x180] sm:$0xff]
    %v166 = vld [vmem:[#allocation2 + $0x198] sm:$0xff]
    %v167 = vpack.c.bf16 %v160, %v159
    %v168 = vpack.c.bf16 %v162, %v161
    %v169 = vpack.c.bf16 %v164, %v163
    %v170 = vpack.c.bf16 %v166, %v165
    %v171 = vpack.c.bf16 %v158, %v158
    %173 = vrot.lane.b32.xlu0 %v96, 64
    %v174 = vpop.permute.xlu0 %173
    %v177 = vsel %vm136, %v171, 0
    %179 = vmatpush.bf16.msra.mxu0 0
    %180 = vmatpush.bf16.msra.mxu0 0
    %181 = vmatpush.bf16.msra.mxu0 0
    %182 = vmatpush.bf16.msra.mxu0 0
    %183 = vmatpush.bf16.msra.mxu0 %v170
    %184 = vmatpush.bf16.msra.mxu0 %v169
    %185 = vmatpush.bf16.msra.mxu0 %v168
    %186 = vmatpush.bf16.msra.mxu0 %v167
    %187 = vmatmul.bf16.gmra.mxu0 %v177
    %v188 = vpop.f32.mrf.mxu0
    %v189 = vadd.f32 %v174, %v188
    %v190 = vpop.f32.mrf.mxu0
    %191 = vdwg.mxu0
    %vm192 = vcmp.gt.f32.partialorder %v189, 0.0
    %v193 = vmin.f32 %v189, 0.0
    %v194 = vmul.f32 %v193, 1.442695
    %v195 = vpow.pop %v194
    %v196 = vsub.f32 %v195, 1.0
    %v197 = vsel %vm192, %v189, %v196
    %v198 = vld [vmem:[#allocation2 + $0x1b0] sm:$0xff]
    %v199 = vld [vmem:[#allocation2 + $0x1c8] sm:$0xff]
    %v200 = vld [vmem:[#allocation2 + $0x1e0] sm:$0xff]
    %v201 = vld [vmem:[#allocation2 + $0x1f8] sm:$0xff]
    %v202 = vld [vmem:[#allocation2 + $0x210] sm:$0xff]
    %v203 = vld [vmem:[#allocation2 + $0x228] sm:$0xff]
    %v204 = vld [vmem:[#allocation2 + $0x240] sm:$0xff]
    %v205 = vld [vmem:[#allocation2 + $0x258] sm:$0xff]
    %v206 = vpack.c.bf16 %v199, %v198
    %v207 = vpack.c.bf16 %v201, %v200
    %v208 = vpack.c.bf16 %v203, %v202
    %v209 = vpack.c.bf16 %v205, %v204
    %v210 = vpack.c.bf16 %v197, %v197
    %v212 = vsel %vm136, %v210, 0
    %214 = vmatpush.bf16.msra.mxu0 0
    %215 = vmatpush.bf16.msra.mxu0 0
    %216 = vmatpush.bf16.msra.mxu0 0
    %217 = vmatpush.bf16.msra.mxu0 0
    %218 = vmatpush.bf16.msra.mxu0 %v209
    %219 = vmatpush.bf16.msra.mxu0 %v208
    %220 = vmatpush.bf16.msra.mxu0 %v207
    %221 = vmatpush.bf16.msra.mxu0 %v206
    %222 = vmatmul.bf16.gmra.mxu0 %v212
    %v223 = vpop.f32.mrf.mxu0
    %v224 = vadd.f32 %v109, %v223
    %v225 = vpop.f32.mrf.mxu0
    %226 = vdwg.mxu0
    %v227 = vadd.f32 %v224, %v122
    %v228 = vld [vmem:[#allocation2 + $0x270] sm:$0xff]
    %v229 = vld [vmem:[#allocation2 + $0x288] sm:$0xff]
    %v230 = vld [vmem:[#allocation2 + $0x2a0] sm:$0xff]
    %v231 = vld [vmem:[#allocation2 + $0x2b8] sm:$0xff]
    %v232 = vld [vmem:[#allocation2 + $0x2d0] sm:$0xff]
    %v233 = vld [vmem:[#allocation2 + $0x2e8] sm:$0xff]
    %v234 = vld [vmem:[#allocation2 + $0x300] sm:$0xff]
    %v235 = vld [vmem:[#allocation2 + $0x318] sm:$0xff]
    %v236 = vpack.c.bf16 %v229, %v228
    %v237 = vpack.c.bf16 %v231, %v230
    %v238 = vpack.c.bf16 %v233, %v232
    %v239 = vpack.c.bf16 %v235, %v234
    %241 = vrot.lane.b32.xlu0 %v135, 64
    %v242 = vpop.permute.xlu0 %241
    %244 = vrot.lane.b32.xlu0 %v109, 127
    %v245 = vpop.permute.xlu0 %244
    %v248 = vsel %vm136, %v242, 0
    %250 = vmatpush.bf16.msra.mxu0 0
    %251 = vmatpush.bf16.msra.mxu0 0
    %252 = vmatpush.bf16.msra.mxu0 0
    %253 = vmatpush.bf16.msra.mxu0 0
    %254 = vmatpush.bf16.msra.mxu0 %v239
    %255 = vmatpush.bf16.msra.mxu0 %v238
    %256 = vmatpush.bf16.msra.mxu0 %v237
    %257 = vmatpush.bf16.msra.mxu0 %v236
    %258 = vmatmul.bf16.gmra.mxu0 %v248
    %v259 = vpop.f32.mrf.mxu0
    %v260 = vadd.f32 %v245, %v259
    %v261 = vpop.f32.mrf.mxu0
    %262 = vdwg.mxu0
    %v263 = vadd.f32 %v260, %v122
    %v264 = vld [vmem:[#allocation2 + $0x330] sm:$0xf]
    %v265 = vpack.c.bf16 %v264, %v264
    %v266 = vpack.c.bf16 %v33, %v32
    %v267 = vpack.c.bf16 %v35, %v34
    %v268 = vpack.c.bf16 %v37, %v36
    %v269 = vpack.c.bf16 %v39, %v38
    %v270 = vld [vmem:[#allocation2 + $0x348] ss:$0 sm:$0xff]
    %vm271 = vcmask 31744
    %v273 = vsel %vm271, %v266, 0
    %v276 = vsel %vm271, %v267, 0
    %v279 = vsel %vm271, %v268, 0
    %v282 = vsel %vm271, %v269, 0
    %v285 = vsel %vm61, %v265, 0
    %287 = vmatpush.bf16.msra.mxu0 0
    %288 = vmatpush.bf16.msra.mxu0 0
    %289 = vmatpush.bf16.msra.mxu0 0
    %290 = vmatpush.bf16.msra.mxu0 0
    %291 = vmatpush.bf16.msra.mxu0 0
    %292 = vmatpush.bf16.msra.mxu0 0
    %293 = vmatpush.bf16.msra.mxu0 0
    %294 = vmatpush.bf16.msra.mxu0 %v285
    %295 = vmatmul.bf16.gmra.mxu0 %v273
    %v296 = vpop.f32.mrf.mxu0
    %v297 = vadd.f32 %v270, %v296
    %v298 = vpop.f32.mrf.mxu0
    %v299 = vadd.f32 %v270, %v298
    %300 = vmatmul.bf16.gmra.mxu0 %v276
    %v301 = vpop.f32.mrf.mxu0
    %v302 = vadd.f32 %v270, %v301
    %v303 = vpop.f32.mrf.mxu0
    %v304 = vadd.f32 %v270, %v303
    %305 = vmatmul.bf16.gmra.mxu0 %v279
    %v306 = vpop.f32.mrf.mxu0
    %v307 = vadd.f32 %v270, %v306
    %v308 = vpop.f32.mrf.mxu0
    %v309 = vadd.f32 %v270, %v308
    %310 = vmatmul.bf16.gmra.mxu0 %v282
    %v311 = vpop.f32.mrf.mxu0
    %v312 = vadd.f32 %v270, %v311
    %v313 = vpop.f32.mrf.mxu0
    %v314 = vadd.f32 %v270, %v313
    %315 = vdwg.mxu0
    %v316 = vmax.f32 %v297, 0.0
    %v317 = vmax.f32 %v299, 0.0
    %v318 = vmax.f32 %v302, 0.0
    %v319 = vmax.f32 %v304, 0.0
    %v320 = vmax.f32 %v307, 0.0
    %v321 = vmax.f32 %v309, 0.0
    %v322 = vmax.f32 %v312, 0.0
    %v323 = vmax.f32 %v314, 0.0
    %v324 = vld [vmem:[#allocation2 + $0x360] sm:$0xff]
    %v325 = vld [vmem:[#allocation2 + $0x378] sm:$0xff]
    %v326 = vld [vmem:[#allocation2 + $0x390] sm:$0xff]
    %v327 = vld [vmem:[#allocation2 + $0x3a8] sm:$0xff]
    %v328 = vld [vmem:[#allocation2 + $0x3c0] sm:$0xff]
    %v329 = vld [vmem:[#allocation2 + $0x3d8] sm:$0xff]
    %v330 = vld [vmem:[#allocation2 + $0x3f0] sm:$0xff]
    %v331 = vld [vmem:[#allocation2 + $0x408] sm:$0xff]
    %v332 = vpack.c.bf16 %v325, %v324
    %v333 = vpack.c.bf16 %v327, %v326
    %v334 = vpack.c.bf16 %v329, %v328
    %v335 = vpack.c.bf16 %v331, %v330
    %v336 = vpack.c.bf16 %v317, %v316
    %v337 = vpack.c.bf16 %v319, %v318
    %v338 = vpack.c.bf16 %v321, %v320
    %v339 = vpack.c.bf16 %v323, %v322
    %v340 = vld [vmem:[#allocation2 + $0x420] ss:$0 sm:$0xff]
    %v342 = vsel %vm136, %v336, 0
    %v345 = vsel %vm136, %v337, 0
    %v348 = vsel %vm136, %v338, 0
    %v351 = vsel %vm136, %v339, 0
    %353 = vmatpush.bf16.msra.mxu0 0
    %354 = vmatpush.bf16.msra.mxu0 0
    %355 = vmatpush.bf16.msra.mxu0 0
    %356 = vmatpush.bf16.msra.mxu0 0
    %357 = vmatpush.bf16.msra.mxu0 %v335
    %358 = vmatpush.bf16.msra.mxu0 %v334
    %359 = vmatpush.bf16.msra.mxu0 %v333
    %360 = vmatpush.bf16.msra.mxu0 %v332
    %361 = vmatmul.bf16.gmra.mxu0 %v342
    %v362 = vpop.f32.mrf.mxu0
    %v363 = vadd.f32 %v340, %v362
    %v364 = vpop.f32.mrf.mxu0
    %v365 = vadd.f32 %v340, %v364
    %366 = vmatmul.bf16.gmra.mxu0 %v345
    %v367 = vpop.f32.mrf.mxu0
    %v368 = vadd.f32 %v340, %v367
    %v369 = vpop.f32.mrf.mxu0
    %v370 = vadd.f32 %v340, %v369
    %371 = vmatmul.bf16.gmra.mxu0 %v348
    %v372 = vpop.f32.mrf.mxu0
    %v373 = vadd.f32 %v340, %v372
    %v374 = vpop.f32.mrf.mxu0
    %v375 = vadd.f32 %v340, %v374
    %376 = vmatmul.bf16.gmra.mxu0 %v351
    %v377 = vpop.f32.mrf.mxu0
    %v378 = vadd.f32 %v340, %v377
    %v379 = vpop.f32.mrf.mxu0
    %v380 = vadd.f32 %v340, %v379
    %381 = vdwg.mxu0
    %v382 = vmax.f32 %v363, 0.0
    %v383 = vmax.f32 %v365, 0.0
    %v384 = vmax.f32 %v368, 0.0
    %v385 = vmax.f32 %v370, 0.0
    %v386 = vmax.f32 %v373, 0.0
    %v387 = vmax.f32 %v375, 0.0
    %v388 = vmax.f32 %v378, 0.0
    %v389 = vmax.f32 %v380, 0.0
    %v390 = vld [vmem:[#allocation2 + $0x438] sm:$0xff]
    %v391 = vld [vmem:[#allocation2 + $0x450] sm:$0xff]
    %v392 = vld [vmem:[#allocation2 + $0x468] sm:$0xff]
    %v393 = vld [vmem:[#allocation2 + $0x480] sm:$0xff]
    %v394 = vld [vmem:[#allocation2 + $0x498] sm:$0xff]
    %v395 = vld [vmem:[#allocation2 + $0x4b0] sm:$0xff]
    %v396 = vld [vmem:[#allocation2 + $0x4c8] sm:$0xff]
    %v397 = vld [vmem:[#allocation2 + $0x4e0] sm:$0xff]
    %v398 = vpack.c.bf16 %v391, %v390
    %v399 = vpack.c.bf16 %v393, %v392
    %v400 = vpack.c.bf16 %v395, %v394
    %v401 = vpack.c.bf16 %v397, %v396
    %v402 = vpack.c.bf16 %v383, %v382
    %v403 = vpack.c.bf16 %v385, %v384
    %v404 = vpack.c.bf16 %v387, %v386
    %v405 = vpack.c.bf16 %v389, %v388
    %v406 = vld [vmem:[#allocation2 + $0x4f8] ss:$0 sm:$0xff]
    %v408 = vsel %vm136, %v402, 0
    %v411 = vsel %vm136, %v403, 0
    %v414 = vsel %vm136, %v404, 0
    %v417 = vsel %vm136, %v405, 0
    %419 = vmatpush.bf16.msra.mxu0 0
    %420 = vmatpush.bf16.msra.mxu0 0
    %421 = vmatpush.bf16.msra.mxu0 0
    %422 = vmatpush.bf16.msra.mxu0 0
    %423 = vmatpush.bf16.msra.mxu0 %v401
    %424 = vmatpush.bf16.msra.mxu0 %v400
    %425 = vmatpush.bf16.msra.mxu0 %v399
    %426 = vmatpush.bf16.msra.mxu0 %v398
    %427 = vmatmul.bf16.gmra.mxu0 %v408
    %v428 = vpop.f32.mrf.mxu0
    %v429 = vadd.f32 %v406, %v428
    %v430 = vpop.f32.mrf.mxu0
    %v431 = vadd.f32 %v406, %v430
    %432 = vmatmul.bf16.gmra.mxu0 %v411
    %v433 = vpop.f32.mrf.mxu0
    %v434 = vadd.f32 %v406, %v433
    %v435 = vpop.f32.mrf.mxu0
    %v436 = vadd.f32 %v406, %v435
    %437 = vmatmul.bf16.gmra.mxu0 %v414
    %v438 = vpop.f32.mrf.mxu0
    %v439 = vadd.f32 %v406, %v438
    %v440 = vpop.f32.mrf.mxu0
    %v441 = vadd.f32 %v406, %v440
    %442 = vmatmul.bf16.gmra.mxu0 %v417
    %v443 = vpop.f32.mrf.mxu0
    %v444 = vadd.f32 %v406, %v443
    %v445 = vpop.f32.mrf.mxu0
    %v446 = vadd.f32 %v406, %v445
    %447 = vdwg.mxu0
    %v448 = vadd.f32 %v429, %v431
    %v449 = vadd.f32 %v448, %v434
    %v450 = vadd.f32 %v449, %v436
    %v451 = vadd.f32 %v450, %v439
    %v452 = vadd.f32 %v451, %v441
    %v453 = vadd.f32 %v452, %v444
    %v454 = vadd.f32 %v453, %v446
    %v455 = vmul.f32 %v454, 0.125
    %v456 = vld [vmem:[#allocation2 + $0x510] sm:$0x1f]
    %v457 = vpack.c.bf16 %v456, %v456
    %v458 = vpack.c.bf16 %v455, %v455
    %v459 = vld [vmem:[#allocation2 + $0x528] ss:$0 sm:$0xff]
    %vm460 = vcmask 39936
    %v462 = vsel %vm460, %v458, 0
    %vm464 = vcmask 1042432
    %v465 = vsel %vm61, 4294967295, 65535
    %v466 = vsel %vm464, %v465, 0
    %v468 = vand.u32 %v457, %v466
    %470 = vmatpush.bf16.msra.mxu0 0
    %471 = vmatpush.bf16.msra.mxu0 0
    %472 = vmatpush.bf16.msra.mxu0 0
    %473 = vmatpush.bf16.msra.mxu0 0
    %474 = vmatpush.bf16.msra.mxu0 0
    %475 = vmatpush.bf16.msra.mxu0 0
    %476 = vmatpush.bf16.msra.mxu0 0
    %477 = vmatpush.bf16.msra.mxu0 %v468
    %478 = vmatmul.bf16.gmra.mxu0 %v462
    %v479 = vpop.f32.mrf.mxu0
    %v480 = vadd.f32 %v459, %v479
    %v481 = vpop.f32.mrf.mxu0
    %482 = vdwg.mxu0
    %v483 = vmax.f32 %v480, 0.0
    %v484 = vld [vmem:[#allocation2 + $0x540] sm:$0xff]
    %v485 = vld [vmem:[#allocation2 + $0x558] sm:$0xff]
    %v486 = vpack.c.bf16 %v485, %v484
    %v487 = vpack.c.bf16 %v483, %v483
    %v488 = vld [vmem:[#allocation2 + $0x570] ss:$0 sm:$0xff]
    %vm489 = vcmask 130048
    %v491 = vsel %vm489, %v487, 0
    %493 = vmatpush.bf16.msra.mxu0 0
    %494 = vmatpush.bf16.msra.mxu0 0
    %495 = vmatpush.bf16.msra.mxu0 0
    %496 = vmatpush.bf16.msra.mxu0 0
    %497 = vmatpush.bf16.msra.mxu0 0
    %498 = vmatpush.bf16.msra.mxu0 0
    %499 = vmatpush.bf16.msra.mxu0 0
    %500 = vmatpush.bf16.msra.mxu0 %v486
    %501 = vmatmul.bf16.gmra.mxu0 %v491
    %v502 = vpop.f32.mrf.mxu0
    %v503 = vadd.f32 %v488, %v502
    %v504 = vpop.f32.mrf.mxu0
    %505 = vdwg.mxu0
    %v506 = vlaneseq
    %v507 = vshrl.u32 %v506, 7
    %vm508 = vcmp.lt.s32.totalorder %v507, 4
    %v509 = vsel %vm508, 1, 0
    %v510 = vcvt.s32.f32 %v509
    %v511 = vmul.f32 %v503, %v510
    %v512 = vsel %vm460, %v511, 0.0
    %v513 = vrot.slane %v512, 4
    %v514 = vadd.f32 %v512, %v513
    %v515 = vrot.slane %v514, 2
    %v516 = vadd.f32 %v514, %v515
    %v517 = vrot.slane %v516, 1
    %v518 = vadd.f32 %v516, %v517
    %v519 = vmul.f32 %v518, 0.25
    %v520 = vsub.f32 %v503, %v519
    %v521 = vmul.f32 %v520, %v510
    %v522 = vmul.f32 %v521, %v521
    %v523 = vsel %vm460, %v522, 0.0
    %v524 = vrot.slane %v523, 4
    %v525 = vadd.f32 %v523, %v524
    %v526 = vrot.slane %v525, 2
    %v527 = vadd.f32 %v525, %v526
    %v528 = vrot.slane %v527, 1
    %v529 = vadd.f32 %v527, %v528
    %v530 = vmul.f32 %v529, 0.25
    %v531 = vadd.f32 %v530, 1e-05
    %v532 = vrsqrt.pop %v531
    %v533 = vmul.f32 %v532, %v531
    %v534 = vmul.f32 %v533, %v532
    %v535 = vmul.f32 0.5, %v534
    %v536 = vsub.f32 1.5, %v535
    %v537 = vmul.f32 %v532, %v536
    %vm538 = vweird.f32 %v531
    %vm539 = vweird.f32 %v532
    %vm540 = vmor %vm538, %vm539
    %v541 = vsel %vm540, %v532, %v537
    %v542 = vmul.f32 %v520, %v541
    %v543 = vld [vmem:[#allocation2 + $0x588] sm:$0xf]
    %v544 = vpack.c.bf16 %v543, %v543
    %v545 = vld [vmem:[#allocation2 + $0x5a0] ss:$0 sm:$0xff]
    %v547 = vsel %vm61, %v544, 0
    %549 = vmatpush.bf16.msra.mxu0 0
    %550 = vmatpush.bf16.msra.mxu0 0
    %551 = vmatpush.bf16.msra.mxu0 0
    %552 = vmatpush.bf16.msra.mxu0 0
    %553 = vmatpush.bf16.msra.mxu0 0
    %554 = vmatpush.bf16.msra.mxu0 0
    %555 = vmatpush.bf16.msra.mxu0 0
    %556 = vmatpush.bf16.msra.mxu0 %v547
    %557 = vmatmul.bf16.gmra.mxu0 %v273
    %v558 = vpop.f32.mrf.mxu0
    %v559 = vadd.f32 %v545, %v558
    %v560 = vpop.f32.mrf.mxu0
    %v561 = vadd.f32 %v545, %v560
    %562 = vmatmul.bf16.gmra.mxu0 %v276
    %v563 = vpop.f32.mrf.mxu0
    %v564 = vadd.f32 %v545, %v563
    %v565 = vpop.f32.mrf.mxu0
    %v566 = vadd.f32 %v545, %v565
    %567 = vmatmul.bf16.gmra.mxu0 %v279
    %v568 = vpop.f32.mrf.mxu0
    %v569 = vadd.f32 %v545, %v568
    %v570 = vpop.f32.mrf.mxu0
    %v571 = vadd.f32 %v545, %v570
    %572 = vmatmul.bf16.gmra.mxu0 %v282
    %v573 = vpop.f32.mrf.mxu0
    %v574 = vadd.f32 %v545, %v573
    %v575 = vpop.f32.mrf.mxu0
    %v576 = vadd.f32 %v545, %v575
    %577 = vdwg.mxu0
    %v578 = vld [vmem:[#allocation2 + $0x5b8] sm:$0xff]
    %v579 = vld [vmem:[#allocation2 + $0x5d0] sm:$0xff]
    %v580 = vld [vmem:[#allocation2 + $0x5e8] sm:$0xff]
    %v581 = vld [vmem:[#allocation2 + $0x600] sm:$0xff]
    %v582 = vld [vmem:[#allocation2 + $0x618] sm:$0xff]
    %v583 = vld [vmem:[#allocation2 + $0x630] sm:$0xff]
    %v584 = vld [vmem:[#allocation2 + $0x648] sm:$0xff]
    %v585 = vld [vmem:[#allocation2 + $0x660] sm:$0xff]
    %v586 = vld [vmem:[#allocation2 + $0x678] sm:$0xff]
    %v587 = vld [vmem:[#allocation2 + $0x690] sm:$0xff]
    %v588 = vld [vmem:[#allocation2 + $0x6a8] sm:$0xff]
    %v589 = vld [vmem:[#allocation2 + $0x6c0] sm:$0xff]
    %v590 = vld [vmem:[#allocation2 + $0x6d8] sm:$0xff]
    %v591 = vld [vmem:[#allocation2 + $0x6f0] sm:$0xff]
    %v592 = vld [vmem:[#allocation2 + $0x708] sm:$0xff]
    %v593 = vld [vmem:[#allocation2 + $0x720] sm:$0xff]
    %v594 = vpack.c.bf16 %v579, %v578
    %v595 = vpack.c.bf16 %v581, %v580
    %v596 = vpack.c.bf16 %v583, %v582
    %v597 = vpack.c.bf16 %v585, %v584
    %v598 = vpack.c.bf16 %v587, %v586
    %v599 = vpack.c.bf16 %v589, %v588
    %v600 = vpack.c.bf16 %v591, %v590
    %v601 = vpack.c.bf16 %v593, %v592
    %v602 = vlaneseq
    %v603 = vand.u32 %v602, 127
    %vm604 = vcmp.ge.s32.totalorder %v603, 64
    %vm605 = vcmp.lt.s32.totalorder %v603, 96
    %vm606 = vmand %vm604, %vm605
    %607 = vmatpush.bf16.msra.mxu0 %v601
    %608 = vmatpush.bf16.msra.mxu0 %v600
    %609 = vmatpush.bf16.msra.mxu0 %v599
    %610 = vmatpush.bf16.msra.mxu0 %v598
    %611 = vmatpush.bf16.msra.mxu0 %v597
    %612 = vmatpush.bf16.msra.mxu0 %v596
    %613 = vmatpush.bf16.msra.mxu0 %v595
    %614 = vmatpush.bf16.msra.mxu0 %v594
    %615 = vmatmul.bf16.gmra.mxu0 0
    %v616 = vpop.f32.mrf.mxu0
    %v617 = vadd.f32 0.0, %v616
    %v618 = vpop.f32.mrf.mxu0
    %619 = vdwg.mxu0
    %v620 = vadd.f32 %v559, %v617
    %v621 = vtanh.pop %v620
    %v622 = vxor.u32 %v620, 2147483648
    %v623 = vmul.f32 %v622, 1.442695
    %v624 = vpow.pop %v623
    %v625 = vadd.f32 %v624, 1.0
    %v626 = vrcp.pop %v625
    %v627 = vmul.f32 %v625, %v626
    %v628 = vsub.f32 1.0, %v627
    %v629 = vmul.f32 %v626, %v628
    %v630 = vadd.f32 %v626, %v629
    %vm631 = vweird.f32 %v625
    %vm632 = vweird.f32 %v626
    %vm633 = vmor %vm631, %vm632
    %v634 = vsel %vm633, %v626, %v630
    %v635 = vand.u32 2147483647, %v625
    %vm636 = vcmp.eq.f32.partialorder %v635, 8.507059e+37
    %v637 = vand.u32 %v625, 2147483648
    %v638 = vor.u32 1.1754944e-38, %v637
    %v639 = vsel %vm636, %v638, %v634
    %v640 = vmul.f32 1.0, %v639
    %v641 = vsel %vm606, %v621, %v640
    %642 = vrot.lane.b32.xlu0 %v641, 64
    %v643 = vpop.permute.xlu0 %642
    %v644 = vmul.f32 %v641, %v643
    %v645 = vmul.f32 %v641, 0.0
    %646 = vrot.lane.b32.xlu0 %v644, 32
    %v647 = vpop.permute.xlu0 %646
    %v648 = vadd.f32 %v645, %v647
    %v649 = vtanh.pop %v648
    %650 = vrot.lane.b32.xlu0 %v649, 64
    %v651 = vpop.permute.xlu0 %650
    %v652 = vmul.f32 %v641, %v651
    %v653 = vpack.c.bf16 %v652, %v652
    %654 = vmatpush.bf16.msra.mxu0 %v601
    %655 = vmatpush.bf16.msra.mxu0 %v600
    %656 = vmatpush.bf16.msra.mxu0 %v599
    %657 = vmatpush.bf16.msra.mxu0 %v598
    %658 = vmatpush.bf16.msra.mxu0 %v597
    %659 = vmatpush.bf16.msra.mxu0 %v596
    %660 = vmatpush.bf16.msra.mxu0 %v595
    %661 = vmatpush.bf16.msra.mxu0 %v594
    %662 = vmatmul.bf16.gmra.mxu0 %v653
    %v663 = vpop.f32.mrf.mxu0
    %v664 = vadd.f32 0.0, %v663
    %v665 = vpop.f32.mrf.mxu0
    %666 = vdwg.mxu0
    %v667 = vadd.f32 %v561, %v664
    %v668 = vtanh.pop %v667
    %v669 = vxor.u32 %v667, 2147483648
    %v670 = vmul.f32 %v669, 1.442695
    %v671 = vpow.pop %v670
    %v672 = vadd.f32 %v671, 1.0
    %v673 = vrcp.pop %v672
    %v674 = vmul.f32 %v672, %v673
    %v675 = vsub.f32 1.0, %v674
    %v676 = vmul.f32 %v673, %v675
    %v677 = vadd.f32 %v673, %v676
    %vm678 = vweird.f32 %v672
    %vm679 = vweird.f32 %v673
    %vm680 = vmor %vm678, %vm679
    %v681 = vsel %vm680, %v673, %v677
    %v682 = vand.u32 2147483647, %v672
    %vm683 = vcmp.eq.f32.partialorder %v682, 8.507059e+37
    %v684 = vand.u32 %v672, 2147483648
    %v685 = vor.u32 1.1754944e-38, %v684
    %v686 = vsel %vm683, %v685, %v681
    %v687 = vmul.f32 1.0, %v686
    %v688 = vsel %vm606, %v668, %v687
    %689 = vrot.lane.b32.xlu0 %v688, 64
    %v690 = vpop.permute.xlu0 %689
    %v691 = vmul.f32 %v688, %v690
    %v692 = vmul.f32 %v688, %v648
    %693 = vrot.lane.b32.xlu0 %v691, 32
    %v694 = vpop.permute.xlu0 %693
    %v695 = vadd.f32 %v692, %v694
    %v696 = vtanh.pop %v695
    %697 = vrot.lane.b32.xlu0 %v696, 64
    %v698 = vpop.permute.xlu0 %697
    %v699 = vmul.f32 %v688, %v698
    %v700 = vpack.c.bf16 %v699, %v699
    %701 = vmatpush.bf16.msra.mxu0 %v601
    %702 = vmatpush.bf16.msra.mxu0 %v600
    %703 = vmatpush.bf16.msra.mxu0 %v599
    %704 = vmatpush.bf16.msra.mxu0 %v598
    %705 = vmatpush.bf16.msra.mxu0 %v597
    %706 = vmatpush.bf16.msra.mxu0 %v596
    %707 = vmatpush.bf16.msra.mxu0 %v595
    %708 = vmatpush.bf16.msra.mxu0 %v594
    %709 = vmatmul.bf16.gmra.mxu0 %v700
    %v710 = vpop.f32.mrf.mxu0
    %v711 = vadd.f32 0.0, %v710
    %v712 = vpop.f32.mrf.mxu0
    %713 = vdwg.mxu0
    %v714 = vadd.f32 %v564, %v711
    %v715 = vtanh.pop %v714
    %v716 = vxor.u32 %v714, 2147483648
    %v717 = vmul.f32 %v716, 1.442695
    %v718 = vpow.pop %v717
    %v719 = vadd.f32 %v718, 1.0
    %v720 = vrcp.pop %v719
    %v721 = vmul.f32 %v719, %v720
    %v722 = vsub.f32 1.0, %v721
    %v723 = vmul.f32 %v720, %v722
    %v724 = vadd.f32 %v720, %v723
    %vm725 = vweird.f32 %v719
    %vm726 = vweird.f32 %v720
    %vm727 = vmor %vm725, %vm726
    %v728 = vsel %vm727, %v720, %v724
    %v729 = vand.u32 2147483647, %v719
    %vm730 = vcmp.eq.f32.partialorder %v729, 8.507059e+37
    %v731 = vand.u32 %v719, 2147483648
    %v732 = vor.u32 1.1754944e-38, %v731
    %v733 = vsel %vm730, %v732, %v728
    %v734 = vmul.f32 1.0, %v733
    %v735 = vsel %vm606, %v715, %v734
    %736 = vrot.lane.b32.xlu0 %v735, 64
    %v737 = vpop.permute.xlu0 %736
    %v738 = vmul.f32 %v735, %v737
    %v739 = vmul.f32 %v735, %v695
    %740 = vrot.lane.b32.xlu0 %v738, 32
    %v741 = vpop.permute.xlu0 %740
    %v742 = vadd.f32 %v739, %v741
    %v743 = vtanh.pop %v742
    %744 = vrot.lane.b32.xlu0 %v743, 64
    %v745 = vpop.permute.xlu0 %744
    %v746 = vmul.f32 %v735, %v745
    %v747 = vpack.c.bf16 %v746, %v746
    %748 = vmatpush.bf16.msra.mxu0 %v601
    %749 = vmatpush.bf16.msra.mxu0 %v600
    %750 = vmatpush.bf16.msra.mxu0 %v599
    %751 = vmatpush.bf16.msra.mxu0 %v598
    %752 = vmatpush.bf16.msra.mxu0 %v597
    %753 = vmatpush.bf16.msra.mxu0 %v596
    %754 = vmatpush.bf16.msra.mxu0 %v595
    %755 = vmatpush.bf16.msra.mxu0 %v594
    %756 = vmatmul.bf16.gmra.mxu0 %v747
    %v757 = vpop.f32.mrf.mxu0
    %v758 = vadd.f32 0.0, %v757
    %v759 = vpop.f32.mrf.mxu0
    %760 = vdwg.mxu0
    %v761 = vadd.f32 %v566, %v758
    %v762 = vtanh.pop %v761
    %v763 = vxor.u32 %v761, 2147483648
    %v764 = vmul.f32 %v763, 1.442695
    %v765 = vpow.pop %v764
    %v766 = vadd.f32 %v765, 1.0
    %v767 = vrcp.pop %v766
    %v768 = vmul.f32 %v766, %v767
    %v769 = vsub.f32 1.0, %v768
    %v770 = vmul.f32 %v767, %v769
    %v771 = vadd.f32 %v767, %v770
    %vm772 = vweird.f32 %v766
    %vm773 = vweird.f32 %v767
    %vm774 = vmor %vm772, %vm773
    %v775 = vsel %vm774, %v767, %v771
    %v776 = vand.u32 2147483647, %v766
    %vm777 = vcmp.eq.f32.partialorder %v776, 8.507059e+37
    %v778 = vand.u32 %v766, 2147483648
    %v779 = vor.u32 1.1754944e-38, %v778
    %v780 = vsel %vm777, %v779, %v775
    %v781 = vmul.f32 1.0, %v780
    %v782 = vsel %vm606, %v762, %v781
    %783 = vrot.lane.b32.xlu0 %v782, 64
    %v784 = vpop.permute.xlu0 %783
    %v785 = vmul.f32 %v782, %v784
    %v786 = vmul.f32 %v782, %v742
    %787 = vrot.lane.b32.xlu0 %v785, 32
    %v788 = vpop.permute.xlu0 %787
    %v789 = vadd.f32 %v786, %v788
    %v790 = vtanh.pop %v789
    %791 = vrot.lane.b32.xlu0 %v790, 64
    %v792 = vpop.permute.xlu0 %791
    %v793 = vmul.f32 %v782, %v792
    %v794 = vpack.c.bf16 %v793, %v793
    %795 = vmatpush.bf16.msra.mxu0 %v601
    %796 = vmatpush.bf16.msra.mxu0 %v600
    %797 = vmatpush.bf16.msra.mxu0 %v599
    %798 = vmatpush.bf16.msra.mxu0 %v598
    %799 = vmatpush.bf16.msra.mxu0 %v597
    %800 = vmatpush.bf16.msra.mxu0 %v596
    %801 = vmatpush.bf16.msra.mxu0 %v595
    %802 = vmatpush.bf16.msra.mxu0 %v594
    %803 = vmatmul.bf16.gmra.mxu0 %v794
    %v804 = vpop.f32.mrf.mxu0
    %v805 = vadd.f32 0.0, %v804
    %v806 = vpop.f32.mrf.mxu0
    %807 = vdwg.mxu0
    %v808 = vadd.f32 %v569, %v805
    %v809 = vtanh.pop %v808
    %v810 = vxor.u32 %v808, 2147483648
    %v811 = vmul.f32 %v810, 1.442695
    %v812 = vpow.pop %v811
    %v813 = vadd.f32 %v812, 1.0
    %v814 = vrcp.pop %v813
    %v815 = vmul.f32 %v813, %v814
    %v816 = vsub.f32 1.0, %v815
    %v817 = vmul.f32 %v814, %v816
    %v818 = vadd.f32 %v814, %v817
    %vm819 = vweird.f32 %v813
    %vm820 = vweird.f32 %v814
    %vm821 = vmor %vm819, %vm820
    %v822 = vsel %vm821, %v814, %v818
    %v823 = vand.u32 2147483647, %v813
    %vm824 = vcmp.eq.f32.partialorder %v823, 8.507059e+37
    %v825 = vand.u32 %v813, 2147483648
    %v826 = vor.u32 1.1754944e-38, %v825
    %v827 = vsel %vm824, %v826, %v822
    %v828 = vmul.f32 1.0, %v827
    %v829 = vsel %vm606, %v809, %v828
    %830 = vrot.lane.b32.xlu0 %v829, 64
    %v831 = vpop.permute.xlu0 %830
    %v832 = vmul.f32 %v829, %v831
    %v833 = vmul.f32 %v829, %v789
    %834 = vrot.lane.b32.xlu0 %v832, 32
    %v835 = vpop.permute.xlu0 %834
    %v836 = vadd.f32 %v833, %v835
    %v837 = vtanh.pop %v836
    %838 = vrot.lane.b32.xlu0 %v837, 64
    %v839 = vpop.permute.xlu0 %838
    %v840 = vmul.f32 %v829, %v839
    %v841 = vpack.c.bf16 %v840, %v840
    %842 = vmatpush.bf16.msra.mxu0 %v601
    %843 = vmatpush.bf16.msra.mxu0 %v600
    %844 = vmatpush.bf16.msra.mxu0 %v599
    %845 = vmatpush.bf16.msra.mxu0 %v598
    %846 = vmatpush.bf16.msra.mxu0 %v597
    %847 = vmatpush.bf16.msra.mxu0 %v596
    %848 = vmatpush.bf16.msra.mxu0 %v595
    %849 = vmatpush.bf16.msra.mxu0 %v594
    %850 = vmatmul.bf16.gmra.mxu0 %v841
    %v851 = vpop.f32.mrf.mxu0
    %v852 = vadd.f32 0.0, %v851
    %v853 = vpop.f32.mrf.mxu0
    %854 = vdwg.mxu0
    %v855 = vadd.f32 %v571, %v852
    %v856 = vtanh.pop %v855
    %v857 = vxor.u32 %v855, 2147483648
    %v858 = vmul.f32 %v857, 1.442695
    %v859 = vpow.pop %v858
    %v860 = vadd.f32 %v859, 1.0
    %v861 = vrcp.pop %v860
    %v862 = vmul.f32 %v860, %v861
    %v863 = vsub.f32 1.0, %v862
    %v864 = vmul.f32 %v861, %v863
    %v865 = vadd.f32 %v861, %v864
    %vm866 = vweird.f32 %v860
    %vm867 = vweird.f32 %v861
    %vm868 = vmor %vm866, %vm867
    %v869 = vsel %vm868, %v861, %v865
    %v870 = vand.u32 2147483647, %v860
    %vm871 = vcmp.eq.f32.partialorder %v870, 8.507059e+37
    %v872 = vand.u32 %v860, 2147483648
    %v873 = vor.u32 1.1754944e-38, %v872
    %v874 = vsel %vm871, %v873, %v869
    %v875 = vmul.f32 1.0, %v874
    %v876 = vsel %vm606, %v856, %v875
    %877 = vrot.lane.b32.xlu0 %v876, 64
    %v878 = vpop.permute.xlu0 %877
    %v879 = vmul.f32 %v876, %v878
    %v880 = vmul.f32 %v876, %v836
    %881 = vrot.lane.b32.xlu0 %v879, 32
    %v882 = vpop.permute.xlu0 %881
    %v883 = vadd.f32 %v880, %v882
    %v884 = vtanh.pop %v883
    %885 = vrot.lane.b32.xlu0 %v884, 64
    %v886 = vpop.permute.xlu0 %885
    %v887 = vmul.f32 %v876, %v886
    %v888 = vpack.c.bf16 %v887, %v887
    %889 = vmatpush.bf16.msra.mxu0 %v601
    %890 = vmatpush.bf16.msra.mxu0 %v600
    %891 = vmatpush.bf16.msra.mxu0 %v599
    %892 = vmatpush.bf16.msra.mxu0 %v598
    %893 = vmatpush.bf16.msra.mxu0 %v597
    %894 = vmatpush.bf16.msra.mxu0 %v596
    %895 = vmatpush.bf16.msra.mxu0 %v595
    %896 = vmatpush.bf16.msra.mxu0 %v594
    %897 = vmatmul.bf16.gmra.mxu0 %v888
    %v898 = vpop.f32.mrf.mxu0
    %v899 = vadd.f32 0.0, %v898
    %v900 = vpop.f32.mrf.mxu0
    %901 = vdwg.mxu0
    %v902 = vadd.f32 %v574, %v899
    %v903 = vtanh.pop %v902
    %v904 = vxor.u32 %v902, 2147483648
    %v905 = vmul.f32 %v904, 1.442695
    %v906 = vpow.pop %v905
    %v907 = vadd.f32 %v906, 1.0
    %v908 = vrcp.pop %v907
    %v909 = vmul.f32 %v907, %v908
    %v910 = vsub.f32 1.0, %v909
    %v911 = vmul.f32 %v908, %v910
    %v912 = vadd.f32 %v908, %v911
    %vm913 = vweird.f32 %v907
    %vm914 = vweird.f32 %v908
    %vm915 = vmor %vm913, %vm914
    %v916 = vsel %vm915, %v908, %v912
    %v917 = vand.u32 2147483647, %v907
    %vm918 = vcmp.eq.f32.partialorder %v917, 8.507059e+37
    %v919 = vand.u32 %v907, 2147483648
    %v920 = vor.u32 1.1754944e-38, %v919
    %v921 = vsel %vm918, %v920, %v916
    %v922 = vmul.f32 1.0, %v921
    %v923 = vsel %vm606, %v903, %v922
    %924 = vrot.lane.b32.xlu0 %v923, 64
    %v925 = vpop.permute.xlu0 %924
    %v926 = vmul.f32 %v923, %v925
    %v927 = vmul.f32 %v923, %v883
    %928 = vrot.lane.b32.xlu0 %v926, 32
    %v929 = vpop.permute.xlu0 %928
    %v930 = vadd.f32 %v927, %v929
    %v931 = vtanh.pop %v930
    %932 = vrot.lane.b32.xlu0 %v931, 64
    %v933 = vpop.permute.xlu0 %932
    %v934 = vmul.f32 %v923, %v933
    %v935 = vpack.c.bf16 %v934, %v934
    %936 = vmatpush.bf16.msra.mxu0 %v601
    %937 = vmatpush.bf16.msra.mxu0 %v600
    %938 = vmatpush.bf16.msra.mxu0 %v599
    %939 = vmatpush.bf16.msra.mxu0 %v598
    %940 = vmatpush.bf16.msra.mxu0 %v597
    %941 = vmatpush.bf16.msra.mxu0 %v596
    %942 = vmatpush.bf16.msra.mxu0 %v595
    %943 = vmatpush.bf16.msra.mxu0 %v594
    %944 = vmatmul.bf16.gmra.mxu0 %v935
    %v945 = vpop.f32.mrf.mxu0
    %v946 = vadd.f32 0.0, %v945
    %v947 = vpop.f32.mrf.mxu0
    %948 = vdwg.mxu0
    %v949 = vadd.f32 %v576, %v946
    %v950 = vtanh.pop %v949
    %v951 = vxor.u32 %v949, 2147483648
    %v952 = vmul.f32 %v951, 1.442695
    %v953 = vpow.pop %v952
    %v954 = vadd.f32 %v953, 1.0
    %v955 = vrcp.pop %v954
    %v956 = vmul.f32 %v954, %v955
    %v957 = vsub.f32 1.0, %v956
    %v958 = vmul.f32 %v955, %v957
    %v959 = vadd.f32 %v955, %v958
    %vm960 = vweird.f32 %v954
    %vm961 = vweird.f32 %v955
    %vm962 = vmor %vm960, %vm961
    %v963 = vsel %vm962, %v955, %v959
    %v964 = vand.u32 2147483647, %v954
    %vm965 = vcmp.eq.f32.partialorder %v964, 8.507059e+37
    %v966 = vand.u32 %v954, 2147483648
    %v967 = vor.u32 1.1754944e-38, %v966
    %v968 = vsel %vm965, %v967, %v963
    %v969 = vmul.f32 1.0, %v968
    %v970 = vsel %vm606, %v950, %v969
    %971 = vrot.lane.b32.xlu0 %v970, 64
    %v972 = vpop.permute.xlu0 %971
    %v973 = vmul.f32 %v970, %v972
    %v974 = vmul.f32 %v970, %v930
    %975 = vrot.lane.b32.xlu0 %v973, 32
    %v976 = vpop.permute.xlu0 %975
    %v977 = vadd.f32 %v974, %v976
    %v978 = vtanh.pop %v977
    %979 = vrot.lane.b32.xlu0 %v978, 64
    %v980 = vpop.permute.xlu0 %979
    %v981 = vmul.f32 %v970, %v980
    %v982 = vld [vmem:[#allocation2 + $0x738] sm:$0xff]
    %v983 = vld [vmem:[#allocation2 + $0x750] sm:$0xff]
    %v984 = vld [vmem:[#allocation2 + $0x768] sm:$0xff]
    %v985 = vld [vmem:[#allocation2 + $0x780] sm:$0xff]
    %v986 = vld [vmem:[#allocation2 + $0x798] sm:$0xff]
    %v987 = vld [vmem:[#allocation2 + $0x7b0] sm:$0xff]
    %v988 = vld [vmem:[#allocation2 + $0x7c8] sm:$0xff]
    %v989 = vld [vmem:[#allocation2 + $0x7e0] sm:$0xff]
    %v990 = vld [vmem:[#allocation2 + $0x7f8] sm:$0xff]
    %v991 = vld [vmem:[#allocation2 + $0x810] sm:$0xff]
    %v992 = vld [vmem:[#allocation2 + $0x828] sm:$0xff]
    %v993 = vld [vmem:[#allocation2 + $0x840] sm:$0xff]
    %v994 = vld [vmem:[#allocation2 + $0x858] sm:$0xff]
    %v995 = vld [vmem:[#allocation2 + $0x870] sm:$0xff]
    %v996 = vld [vmem:[#allocation2 + $0x888] sm:$0xff]
    %v997 = vld [vmem:[#allocation2 + $0x8a0] sm:$0xff]
    %v998 = vpack.c.bf16 %v983, %v982
    %v999 = vpack.c.bf16 %v985, %v984
    %v1000 = vpack.c.bf16 %v987, %v986
    %v1001 = vpack.c.bf16 %v989, %v988
    %v1002 = vpack.c.bf16 %v991, %v990
    %v1003 = vpack.c.bf16 %v993, %v992
    %v1004 = vpack.c.bf16 %v995, %v994
    %v1005 = vpack.c.bf16 %v997, %v996
    %v1006 = vpack.c.bf16 %v981, %v981
    %v1007 = vld [vmem:[#allocation2 + $0x8b8] ss:$0 sm:$0xff]
    %1008 = vmatpush.bf16.msra.mxu0 %v1005
    %1009 = vmatpush.bf16.msra.mxu0 %v1004
    %1010 = vmatpush.bf16.msra.mxu0 %v1003
    %1011 = vmatpush.bf16.msra.mxu0 %v1002
    %1012 = vmatpush.bf16.msra.mxu0 %v1001
    %1013 = vmatpush.bf16.msra.mxu0 %v1000
    %1014 = vmatpush.bf16.msra.mxu0 %v999
    %1015 = vmatpush.bf16.msra.mxu0 %v998
    %1016 = vmatmul.bf16.gmra.mxu0 %v1006
    %v1017 = vpop.f32.mrf.mxu0
    %v1018 = vadd.f32 %v1007, %v1017
    %v1019 = vpop.f32.mrf.mxu0
    %1020 = vdwg.mxu0
    %v1021 = vmul.f32 %v1018, %v510
    %vm1022 = vcmask 48128
    %v1023 = vsel %vm1022, %v1021, 0.0
    %v1024 = vrot.slane %v1023, 4
    %v1025 = vadd.f32 %v1023, %v1024
    %v1026 = vrot.slane %v1025, 2
    %v1027 = vadd.f32 %v1025, %v1026
    %v1028 = vrot.slane %v1027, 1
    %v1029 = vadd.f32 %v1027, %v1028
    %v1030 = vmul.f32 %v1029, 0.25
    %v1031 = vsub.f32 %v1018, %v1030
    %v1032 = vmul.f32 %v1031, %v510
    %v1033 = vmul.f32 %v1032, %v1032
    %v1034 = vsel %vm1022, %v1033, 0.0
    %v1035 = vrot.slane %v1034, 4
    %v1036 = vadd.f32 %v1034, %v1035
    %v1037 = vrot.slane %v1036, 2
    %v1038 = vadd.f32 %v1036, %v1037
    %v1039 = vrot.slane %v1038, 1
    %v1040 = vadd.f32 %v1038, %v1039
    %v1041 = vmul.f32 %v1040, 0.25
    %v1042 = vadd.f32 %v1041, 1e-05
    %v1043 = vrsqrt.pop %v1042
    %v1044 = vmul.f32 %v1043, %v1042
    %v1045 = vmul.f32 %v1044, %v1043
    %v1046 = vmul.f32 0.5, %v1045
    %v1047 = vsub.f32 1.5, %v1046
    %v1048 = vmul.f32 %v1043, %v1047
    %vm1049 = vweird.f32 %v1042
    %vm1050 = vweird.f32 %v1043
    %vm1051 = vmor %vm1049, %vm1050
    %v1052 = vsel %vm1051, %v1043, %v1048
    %v1053 = vmul.f32 %v1031, %v1052
    %1054 = vst [vmem:[%s3] sm:$0xff] 0.0
    %vm1055 = vcmask 7168
    %1056 = vst.msk [vmem:[%s3] sm:$0xff] %vm1055, %v227
    %1058 = vrot.lane.b32.xlu0 %v263, 1
    %v1059 = vpop.permute.xlu0 %1058
    %vm1061 = vcmask 97288
    %1062 = vst.msk [vmem:[%s3] sm:$0xff] %vm1061, %v1059
    %1064 = vrot.lane.b32.xlu0 %v542, 12
    %v1065 = vpop.permute.xlu0 %1064
    %vm1067 = vcmask 138336
    %1068 = vst.msk [vmem:[%s3] sm:$0xff] %vm1067, %v1065
    %1070 = vrot.lane.b32.xlu0 %v1053, 17
    %v1071 = vpop.permute.xlu0 %1070
    %vm1073 = vcmask 187528
    %1074 = vst.msk [vmem:[%s3] sm:$0xff] %vm1073, %v1071
    // Predicated region
    $region18: #{ccq_forward.1} parent=1 // pred_check
      _
    $region19: #{ccq_forward.1} parent=1 // pred_check_branch
      %1076 = sbr.rel (0) target = $region21
    $region20: #{ccq_forward.1} parent=1 // pred_region
      _
    $region21: #{ccq_forward.1} parent=1 // pred_fallthru
      _
    // Predicated region
    $region22: #{ccq_forward.1} parent=1 // pred_check
      _
    $region23: #{ccq_forward.1} parent=1 // pred_check_branch
      %1078 = sbr.rel (0) target = $region25
    $region24: #{ccq_forward.1} parent=1 // pred_region
      _
    $region25: #{ccq_forward.1} parent=1 // pred_fallthru
      _
    %1079 = vsyncpa [#allocation3], 1

</llo_original>
